<compile_context>
chip_gen: v6e
topology: v6e:2x2x1
jax: 0.10.0
libtpu: 0.0.40
codegen_flags: <defaults>
</compile_context>

<pallas_src>
import math
from functools import partial

import jax
import jax.numpy as jnp
from jax import lax
from jax.experimental import pallas as pl
from jax.experimental.pallas import tpu as pltpu

_INV_SQRT_2PI = 1.0 / math.sqrt(2.0 * math.pi)


def _round_up(x, m):
    return (x + m - 1) // m * m


def _padded_f32_bytes(shape):
    """VMEM footprint of one f32 tile (lane dim padded to 128, sublane to 8)."""
    s = list(shape)
    if len(s) >= 1:
        s[-1] = _round_up(s[-1], 128)
    if len(s) >= 2:
        s[-2] = _round_up(s[-2], 8)
    n = 1
    for d in s:
        n *= d
    return 4 * n


def _vmem_config():
    """Per-generation VMEM budget (v5e/v6e: 128 MiB physical; v7x: 64 MiB)."""
    cap = None
    try:
        info = pltpu.get_tpu_info()
        cap = int(getattr(info, "vmem_capacity_bytes", 0)) or None
    except Exception:
        cap = None
    if cap is None:
        cap = 64 * 1024 * 1024                     # conservative default (v7x)
    block_budget = max(8 << 20, cap // 6)          # ~21 MiB on 128 MiB parts
    vmem_limit = max(32 << 20, min(3 * cap // 4, 96 << 20))
    return block_budget, vmem_limit


def _choose_row_tile(L, H, E, D, block_budget):
    """Pick TQ (query rows per grid step).

    TQ divides L and is a multiple of 8 (or equals L) so the (H, TQ, L)
    series/prior output blocks satisfy the (8, 128) tiling rule.  k/v keep the
    full key axis (softmax stays exact); when their double-buffered footprint
    alone is large we plan to single-buffer them (their block index is
    constant along the inner row axis)."""
    kv_bytes = _padded_f32_bytes((L, H, E)) + _padded_f32_bytes((L, H, D))
    single_buffer_kv = 2 * kv_bytes > block_budget // 2
    kv_mult = 1 if single_buffer_kv else 2

    def per_step_bytes(tq):
        rest = (_padded_f32_bytes((tq, H, E))        # q
                + _padded_f32_bytes((tq, H))         # sigma in
                + _padded_f32_bytes((tq, H, D))      # V out
                + 2 * _padded_f32_bytes((H, tq, L))  # series + prior out
                + _padded_f32_bytes((tq, H)))        # sigma out
        return 2 * rest + kv_mult * kv_bytes         # blocks are double-buffered

    cands = [L] + sorted((d for d in range(8, L, 8) if L % d == 0), reverse=True)
    tq = cands[-1]
    for c in cands:
        if per_step_bytes(c) <= block_budget:
            tq = c
            break
    return tq, single_buffer_kv


def _anomaly_attention_kernel(q_ref, k_ref, v_ref, sig_ref,
                              v_out_ref, series_ref, prior_ref, sig_out_ref,
                              *, scale):
    # q_ref:   (TQ, H, E)  query rows of this (batch, row-tile) step
    # k_ref:   (L,  H, E)  full key axis       v_ref: (L, H, D)
    # sig_ref: (TQ, H)     raw sigma, lane-dense (H on lanes)
    # outputs: V (TQ, H, D), series/prior (H, TQ, L), sigma (TQ, H)
    TQ, H, _ = q_ref.shape
    L = k_ref.shape[0]
    j = pl.program_id(1)

    # Rebuild |i-j|^2 and the triangular-causal bias from iotas (no HBM tables).
    row = lax.broadcasted_iota(jnp.int32, (TQ, L), 0) + j * TQ
    col = lax.broadcasted_iota(jnp.int32, (TQ, L), 1)
    mask_bias = jnp.where(col > row, -jnp.inf, 0.0).astype(jnp.float32)
    dist = (row - col).astype(jnp.float32)
    dist_sq = dist * dist

    # sigma transform: sigmoid(5*sigma) + 1e-5 ; 3**sigma - 1  (lane-dense store)
    s_all = jax.nn.sigmoid(sig_ref[...] * 5.0) + 1e-5            # (TQ, H)
    s_all = jnp.power(3.0, s_all) - 1.0
    sig_out_ref[...] = s_all.astype(sig_out_ref.dtype)

    scale_f = jnp.float32(scale)

    # Per-head 2-D matmuls (H is small & static) keep everything in the
    # natural (B, L, H, *) layout — no transposes anywhere.
    for h in range(H):
        # 1/sqrt(E) folded into q: O(TQ*E) instead of O(TQ*L); the -inf mask
        # is scale-invariant so adding it to the scaled scores is identical.
        q_h = q_ref[:, h, :] * scale_f                            # (TQ, E)
        k_h = k_ref[:, h, :]                                      # (L, E)
        scores = lax.dot_general(
            q_h, k_h, dimension_numbers=(((1,), (1,)), ((), ())),
            preferred_element_type=jnp.float32)                   # (TQ, L)
        attn = scores + mask_bias

        # series = softmax(attn, -1); dropout p=0.0 -> identity.
        m = jnp.max(attn, axis=-1, keepdims=True)
        e = jnp.exp(attn - m)
        denom = jnp.sum(e, axis=-1, keepdims=True)                # (TQ, 1)
        series_h = e * pl.reciprocal(denom, approx=False)         # (TQ, L)

        # prior: Gaussian of |i-j| with per-row sigma; divides only on the
        # (TQ, 1) column, the (TQ, L) work is mul + exp.
        s_h = s_all[:, h:h + 1]                                   # (TQ, 1)
        inv_s = pl.reciprocal(s_h, approx=False)
        coef = -0.5 * inv_s * inv_s
        prior_h = (inv_s * _INV_SQRT_2PI) * jnp.exp(dist_sq * coef)

        v_h = v_ref[:, h, :]                                      # (L, D)
        V_h = jnp.dot(series_h, v_h, preferred_element_type=jnp.float32)

        series_ref[h] = series_h.astype(series_ref.dtype)
        prior_ref[h] = prior_h.astype(prior_ref.dtype)
        v_out_ref[:, h, :] = V_h.astype(v_out_ref.dtype)


def anomaly_attention(queries, keys, values, sigma, *, scale=None,
                      attn_dtype=jnp.float32, broadcast_sigma=False):
    """queries/keys: (B, L, H, E); values: (B, L, H, D); sigma: (B, L, H).

    Matches AnomalyAttention._forward_standard (mask_flag=True,
    output_attention=True, attn_mask=None, attention_dropout=0.0).
    Returns (V, series, prior, sigma_t) with
      V (B, L, H, D), series/prior (B, H, L, L), sigma_t (B, H, L) compact.
    Set broadcast_sigma=True to materialize the module's (B, H, L, L) sigma
    repeat (all columns identical).  attn_dtype lets callers emit series/prior
    in bf16 to halve writeback; in-kernel math stays float32."""
    B, L, H, E = queries.shape
    D = values.shape[-1]
    sc = scale if scale is not None else 1.0 / math.sqrt(E)

    block_budget, vmem_limit = _vmem_config()
    TQ, single_buffer_kv = _choose_row_tile(L, H, E, D, block_budget)
    NJ = L // TQ
    grid = (B, NJ)

    # k/v block indices are constant along the inner row axis; when VMEM-tight
    # drop their double-buffering (stalls only at batch boundaries).
    kv_pipeline = pl.Buffered(1) if (single_buffer_kv and NJ >= 2) else None

    def kv_spec(last_dim):
        kwargs = {} if kv_pipeline is None else {"pipeline_mode": kv_pipeline}
        return pl.BlockSpec((None, L, H, last_dim), lambda b, j: (b, 0, 0, 0),
                            **kwargs)

    in_specs = [
        pl.BlockSpec((None, TQ, H, E), lambda b, j: (b, j, 0, 0)),   # q
        kv_spec(E),                                                  # k
        kv_spec(D),                                                  # v
        pl.BlockSpec((None, TQ, H), lambda b, j: (b, j, 0)),         # sigma
    ]
    out_shapes = (
        jax.ShapeDtypeStruct((B, L, H, D), jnp.float32),   # V
        jax.ShapeDtypeStruct((B, H, L, L), attn_dtype),    # series
        jax.ShapeDtypeStruct((B, H, L, L), attn_dtype),    # prior
        jax.ShapeDtypeStruct((B, L, H), jnp.float32),      # transformed sigma
    )
    out_specs = (
        pl.BlockSpec((None, TQ, H, D), lambda b, j: (b, j, 0, 0)),
        pl.BlockSpec((None, H, TQ, L), lambda b, j: (b, 0, j, 0)),
        pl.BlockSpec((None, H, TQ, L), lambda b, j: (b, 0, j, 0)),
        pl.BlockSpec((None, TQ, H), lambda b, j: (b, j, 0)),
    )

    attn_bytes = jnp.dtype(attn_dtype).itemsize
    cost = pl.CostEstimate(
        flops=int(2 * B * H * L * L * (E + D) + 8 * B * H * L * L),
        transcendentals=int(2 * B * H * L * L + 3 * B * L * H),
        bytes_accessed=int(
            4 * (B * L * H * E + NJ * B * L * H * (E + D) + B * L * H)
            + 4 * (B * L * H * D + B * L * H)
            + 2 * attn_bytes * B * H * L * L),
    )

    # Both grid axes are embarrassingly parallel (disjoint output tiles), so
    # v7x's two TensorCores can shard either axis; on single-core v5e/v6e the
    # semantics are a no-op.
    V, series, prior, sig_blh = pl.pallas_call(
        partial(_anomaly_attention_kernel, scale=sc),
        out_shape=out_shapes,
        grid_spec=pltpu.PrefetchScalarGridSpec(
            num_scalar_prefetch=0,
            grid=grid,
            in_specs=in_specs,
            out_specs=out_specs,
        ),
        compiler_params=pltpu.CompilerParams(
            dimension_semantics=("parallel", "parallel"),
            vmem_limit_bytes=vmem_limit,
        ),
        cost_estimate=cost,
    )(queries, keys, values, sigma)

    sigma_t = jnp.transpose(sig_blh, (0, 2, 1))         # (B, H, L) — tiny
    if broadcast_sigma:
        # Module semantics: sigma.unsqueeze(-1).repeat(..., L). Materialized
        # only on request; all columns are identical.
        sigma_t = jnp.broadcast_to(sigma_t[..., None], (B, H, L, L))
    return V, series, prior, sigma_t


def _reference(queries, keys, values, sigma):
    """Pure-JAX reference mirroring the PyTorch _forward_standard."""
    B, L, H, E = queries.shape
    scale = 1.0 / math.sqrt(E)
    scores = jnp.einsum('blhe,bshe->bhls', queries, keys)
    causal = jnp.triu(jnp.ones((L, L), dtype=bool), k=1)
    scores = jnp.where(causal[None, None], -jnp.inf, scores)
    attn = scale * scores
    sg = jnp.transpose(sigma, (0, 2, 1))                       # (B, H, L)
    sg = jax.nn.sigmoid(sg * 5.0) + 1e-5
    sg = jnp.power(3.0, sg) - 1.0
    sg_full = jnp.broadcast_to(sg[..., None], (B, H, L, L))
    dist = jnp.abs(jnp.arange(L)[:, None] - jnp.arange(L)[None, :]).astype(jnp.float32)
    prior = (1.0 / (math.sqrt(2.0 * math.pi) * sg_full)
             * jnp.exp(-dist[None, None] ** 2 / 2.0 / sg_full ** 2))
    series = jax.nn.softmax(attn, axis=-1)
    V = jnp.einsum('bhls,bshd->blhd', series, values)
    return V, series, prior, sg_full


if __name__ == "__main__":
    # small shapes consistent with the module: win_size = L
    B, L, H, E = 2, 16, 4, 32
    D = E
    key = jax.random.PRNGKey(0)
    kq, kk, kv, ks = jax.random.split(key, 4)
    queries = jax.random.normal(kq, (B, L, H, E), dtype=jnp.float32)
    keys = jax.random.normal(kk, (B, L, H, E), dtype=jnp.float32)
    values = jax.random.normal(kv, (B, L, H, D), dtype=jnp.float32)
    sigma = jax.random.normal(ks, (B, L, H), dtype=jnp.float32)

    attn_fn = jax.jit(anomaly_attention)
    V, series, prior, sigma_t = jax.block_until_ready(
        attn_fn(queries, keys, values, sigma))

    V_r, series_r, prior_r, sigma_r = _reference(queries, keys, values, sigma)
    assert jnp.allclose(V, V_r, atol=1e-4, rtol=1e-4)
    assert jnp.allclose(series, series_r, atol=1e-5, rtol=1e-5)
    assert jnp.allclose(prior, prior_r, atol=1e-5, rtol=1e-5)
    sigma_full = jnp.broadcast_to(sigma_t[..., None], (B, H, L, L))
    assert jnp.allclose(sigma_full, sigma_r, atol=1e-6, rtol=1e-6)

    print("KERNEL_OK")
</pallas_src>

<mosaic_0001>
module attributes {stable_mosaic.version = 11 : i64} {
  func.func @_anomaly_attention_kernel(%arg0: i32, %arg1: i32, %arg2: memref<1x16x4x32xf32, #tpu.memory_space<vmem>>, %arg3: memref<1x16x4x32xf32, #tpu.memory_space<vmem>>, %arg4: memref<1x16x4x32xf32, #tpu.memory_space<vmem>>, %arg5: memref<1x16x4xf32, #tpu.memory_space<vmem>>, %arg6: memref<1x16x4x32xf32, #tpu.memory_space<vmem>>, %arg7: memref<1x4x16x16xf32, #tpu.memory_space<vmem>>, %arg8: memref<1x4x16x16xf32, #tpu.memory_space<vmem>>, %arg9: memref<1x16x4xf32, #tpu.memory_space<vmem>>) attributes {dimension_semantics = [#tpu.dimension_semantics<parallel>, #tpu.dimension_semantics<parallel>], iteration_bounds = array<i64: 2, 1>, scalar_prefetch = 0 : i64, scratch_operands = 0 : i64, tpu.core_type = #tpu.core_type<tc>, window_params = [{transform_indices = @transform_0, window_bounds = array<i64: 1, 16, 4, 32>}, {transform_indices = @transform_1, window_bounds = array<i64: 1, 16, 4, 32>}, {transform_indices = @transform_2, window_bounds = array<i64: 1, 16, 4, 32>}, {transform_indices = @transform_3, window_bounds = array<i64: 1, 16, 4>}, {transform_indices = @transform_4, window_bounds = array<i64: 1, 16, 4, 32>}, {transform_indices = @transform_5, window_bounds = array<i64: 1, 4, 16, 16>}, {transform_indices = @transform_6, window_bounds = array<i64: 1, 4, 16, 16>}, {transform_indices = @transform_7, window_bounds = array<i64: 1, 16, 4>}]} {
    %0 = tpu.iota {dimensions = array<i32: 0>} : vector<16x16xi32>
    %c16_i32 = arith.constant 16 : i32
    %1 = arith.muli %arg1, %c16_i32 : i32
    %2 = vector.broadcast %1 : i32 to vector<16x16xi32>
    %3 = arith.addi %0, %2 : vector<16x16xi32>
    %4 = tpu.iota {dimensions = array<i32: 1>} : vector<16x16xi32>
    %5 = arith.cmpi sgt, %4, %3 : vector<16x16xi32>
    %cst = arith.constant 0xFF800000 : f32
    %cst_0 = arith.constant 0.000000e+00 : f32
    %6 = vector.broadcast %cst : f32 to vector<16x16xf32>
    %7 = vector.broadcast %cst_0 : f32 to vector<16x16xf32>
    %8 = arith.select %5, %6, %7 : vector<16x16xi1>, vector<16x16xf32>
    %9 = arith.subi %3, %4 : vector<16x16xi32>
    %10 = arith.sitofp %9 : vector<16x16xi32> to vector<16x16xf32>
    %11 = arith.mulf %10, %10 : vector<16x16xf32>
    %c0 = arith.constant 0 : index
    %c0_1 = arith.constant 0 : index
    %c0_2 = arith.constant 0 : index
    %12 = vector.load %arg5[%c0, %c0_1, %c0_2] : memref<1x16x4xf32, #tpu.memory_space<vmem>>, vector<1x16x4xf32>
    %13 = vector.shape_cast %12 : vector<1x16x4xf32> to vector<16x4xf32>
    %cst_3 = arith.constant 5.000000e+00 : f32
    %14 = vector.broadcast %cst_3 : f32 to vector<16x4xf32>
    %15 = arith.mulf %13, %14 : vector<16x4xf32>
    %16 = arith.negf %15 : vector<16x4xf32>
    %17 = math.exp %16 : vector<16x4xf32>
    %cst_4 = arith.constant 1.000000e+00 : f32
    %18 = vector.broadcast %cst_4 : f32 to vector<16x4xf32>
    %19 = arith.addf %18, %17 : vector<16x4xf32>
    %20 = arith.divf %18, %19 : vector<16x4xf32>
    %cst_5 = arith.constant 9.99999974E-6 : f32
    %21 = vector.broadcast %cst_5 : f32 to vector<16x4xf32>
    %22 = arith.addf %20, %21 : vector<16x4xf32>
    %cst_6 = arith.constant 3.000000e+00 : f32
    %23 = vector.broadcast %cst_6 : f32 to vector<16x4xf32>
    %24 = math.powf %23, %22 : vector<16x4xf32>
    %cst_7 = arith.constant 1.000000e+00 : f32
    %25 = vector.broadcast %cst_7 : f32 to vector<16x4xf32>
    %26 = arith.subf %24, %25 : vector<16x4xf32>
    %c0_8 = arith.constant 0 : index
    %c0_9 = arith.constant 0 : index
    %c0_10 = arith.constant 0 : index
    %27 = vector.load %arg9[%c0_8, %c0_9, %c0_10] : memref<1x16x4xf32, #tpu.memory_space<vmem>>, vector<1x16x4xf32>
    %28 = vector.shape_cast %27 : vector<1x16x4xf32> to vector<16x4xf32>
    %29 = vector.shape_cast %26 : vector<16x4xf32> to vector<1x16x4xf32>
    tpu.vector_store %arg9[%c0_8, %c0_9, %c0_10], %29 {strides = array<i32>} : memref<1x16x4xf32, #tpu.memory_space<vmem>>, vector<1x16x4xf32>,
    %c0_11 = arith.constant 0 : index
    %c0_12 = arith.constant 0 : index
    %c0_13 = arith.constant 0 : index
    %c0_14 = arith.constant 0 : index
    %30 = vector.load %arg2[%c0_11, %c0_12, %c0_13, %c0_14] : memref<1x16x4x32xf32, #tpu.memory_space<vmem>>, vector<1x16x1x32xf32>
    %31 = vector.shape_cast %30 : vector<1x16x1x32xf32> to vector<16x32xf32>
    %cst_15 = arith.constant 0.176776692 : f32
    %32 = vector.broadcast %cst_15 : f32 to vector<16x32xf32>
    %33 = arith.mulf %31, %32 : vector<16x32xf32>
    %c0_16 = arith.constant 0 : index
    %c0_17 = arith.constant 0 : index
    %c0_18 = arith.constant 0 : index
    %c0_19 = arith.constant 0 : index
    %34 = vector.load %arg3[%c0_16, %c0_17, %c0_18, %c0_19] : memref<1x16x4x32xf32, #tpu.memory_space<vmem>>, vector<1x16x1x32xf32>
    %35 = vector.shape_cast %34 : vector<1x16x1x32xf32> to vector<16x32xf32>
    %cst_20 = arith.constant dense<0.000000e+00> : vector<16x16xf32>
    %36 = tpu.matmul %33, %35, %cst_20 {dimension_numbers = #tpu.dot_dimension_numbers<[1], [1], [0], [0], [0, 0, 1, 0], [], []>} : vector<16x32xf32>, vector<16x32xf32>, vector<16x16xf32> -> vector<16x16xf32>
    %37 = arith.addf %36, %8 : vector<16x16xf32>
    %cst_21 = arith.constant dense<0xFF800000> : vector<16xf32>
    %38 = vector.multi_reduction <maximumf>, %37, %cst_21 [1] : vector<16x16xf32> to vector<16xf32>
    %39 = vector.shape_cast %38 : vector<16xf32> to vector<16x1xf32>
    %40 = vector.broadcast %39 : vector<16x1xf32> to vector<16x16xf32>
    %41 = arith.subf %37, %40 : vector<16x16xf32>
    %42 = math.exp %41 : vector<16x16xf32>
    %cst_22 = arith.constant dense<0.000000e+00> : vector<16xf32>
    %43 = vector.multi_reduction <add>, %42, %cst_22 [1] : vector<16x16xf32> to vector<16xf32>
    %44 = vector.shape_cast %43 : vector<16xf32> to vector<16x1xf32>
    %45 = tpu.reciprocal %44 : vector<16x1xf32> -> vector<16x1xf32>
    %46 = vector.broadcast %45 : vector<16x1xf32> to vector<16x16xf32>
    %47 = arith.mulf %42, %46 : vector<16x16xf32>
    %48 = vector.extract_strided_slice %26 {offsets = [0, 0], sizes = [16, 1], strides = [1, 1]} : vector<16x4xf32> to vector<16x1xf32>
    %49 = tpu.reciprocal %48 : vector<16x1xf32> -> vector<16x1xf32>
    %cst_23 = arith.constant -5.000000e-01 : f32
    %50 = vector.broadcast %cst_23 : f32 to vector<16x1xf32>
    %51 = arith.mulf %50, %49 : vector<16x1xf32>
    %52 = arith.mulf %51, %49 : vector<16x1xf32>
    %cst_24 = arith.constant 0.398942292 : f32
    %53 = vector.broadcast %cst_24 : f32 to vector<16x1xf32>
    %54 = arith.mulf %49, %53 : vector<16x1xf32>
    %55 = vector.broadcast %52 : vector<16x1xf32> to vector<16x16xf32>
    %56 = arith.mulf %11, %55 : vector<16x16xf32>
    %57 = math.exp %56 : vector<16x16xf32>
    %58 = vector.broadcast %54 : vector<16x1xf32> to vector<16x16xf32>
    %59 = arith.mulf %58, %57 : vector<16x16xf32>
    %c0_25 = arith.constant 0 : index
    %c0_26 = arith.constant 0 : index
    %c0_27 = arith.constant 0 : index
    %c0_28 = arith.constant 0 : index
    %60 = vector.load %arg4[%c0_25, %c0_26, %c0_27, %c0_28] : memref<1x16x4x32xf32, #tpu.memory_space<vmem>>, vector<1x16x1x32xf32>
    %61 = vector.shape_cast %60 : vector<1x16x1x32xf32> to vector<16x32xf32>
    %cst_29 = arith.constant dense<0.000000e+00> : vector<16x32xf32>
    %62 = tpu.matmul %47, %61, %cst_29 {dimension_numbers = #tpu.dot_dimension_numbers<[1], [0], [0], [1], [0, 0, 1, 1], [], []>} : vector<16x16xf32>, vector<16x32xf32>, vector<16x32xf32> -> vector<16x32xf32>
    %c0_30 = arith.constant 0 : index
    %c0_31 = arith.constant 0 : index
    %c0_32 = arith.constant 0 : index
    %c0_33 = arith.constant 0 : index
    %63 = vector.load %arg7[%c0_30, %c0_31, %c0_32, %c0_33] : memref<1x4x16x16xf32, #tpu.memory_space<vmem>>, vector<1x1x16x16xf32>
    %64 = vector.shape_cast %63 : vector<1x1x16x16xf32> to vector<16x16xf32>
    %65 = vector.shape_cast %47 : vector<16x16xf32> to vector<1x1x16x16xf32>
    tpu.vector_store %arg7[%c0_30, %c0_31, %c0_32, %c0_33], %65 {strides = array<i32>} : memref<1x4x16x16xf32, #tpu.memory_space<vmem>>, vector<1x1x16x16xf32>,
    %c0_34 = arith.constant 0 : index
    %c0_35 = arith.constant 0 : index
    %c0_36 = arith.constant 0 : index
    %c0_37 = arith.constant 0 : index
    %66 = vector.load %arg8[%c0_34, %c0_35, %c0_36, %c0_37] : memref<1x4x16x16xf32, #tpu.memory_space<vmem>>, vector<1x1x16x16xf32>
    %67 = vector.shape_cast %66 : vector<1x1x16x16xf32> to vector<16x16xf32>
    %68 = vector.shape_cast %59 : vector<16x16xf32> to vector<1x1x16x16xf32>
    tpu.vector_store %arg8[%c0_34, %c0_35, %c0_36, %c0_37], %68 {strides = array<i32>} : memref<1x4x16x16xf32, #tpu.memory_space<vmem>>, vector<1x1x16x16xf32>,
    %c0_38 = arith.constant 0 : index
    %c0_39 = arith.constant 0 : index
    %c0_40 = arith.constant 0 : index
    %c0_41 = arith.constant 0 : index
    %69 = vector.load %arg6[%c0_38, %c0_39, %c0_40, %c0_41] : memref<1x16x4x32xf32, #tpu.memory_space<vmem>>, vector<1x16x1x32xf32>
    %70 = vector.shape_cast %69 : vector<1x16x1x32xf32> to vector<16x32xf32>
    %71 = vector.shape_cast %62 : vector<16x32xf32> to vector<1x16x1x32xf32>
    tpu.vector_store %arg6[%c0_38, %c0_39, %c0_40, %c0_41], %71 {strides = array<i32>} : memref<1x16x4x32xf32, #tpu.memory_space<vmem>>, vector<1x16x1x32xf32>,
    %c0_42 = arith.constant 0 : index
    %c0_43 = arith.constant 0 : index
    %c1 = arith.constant 1 : index
    %c0_44 = arith.constant 0 : index
    %72 = vector.load %arg2[%c0_42, %c0_43, %c1, %c0_44] : memref<1x16x4x32xf32, #tpu.memory_space<vmem>>, vector<1x16x1x32xf32>
    %73 = vector.shape_cast %72 : vector<1x16x1x32xf32> to vector<16x32xf32>
    %cst_45 = arith.constant 0.176776692 : f32
    %74 = vector.broadcast %cst_45 : f32 to vector<16x32xf32>
    %75 = arith.mulf %73, %74 : vector<16x32xf32>
    %c0_46 = arith.constant 0 : index
    %c0_47 = arith.constant 0 : index
    %c1_48 = arith.constant 1 : index
    %c0_49 = arith.constant 0 : index
    %76 = vector.load %arg3[%c0_46, %c0_47, %c1_48, %c0_49] : memref<1x16x4x32xf32, #tpu.memory_space<vmem>>, vector<1x16x1x32xf32>
    %77 = vector.shape_cast %76 : vector<1x16x1x32xf32> to vector<16x32xf32>
    %cst_50 = arith.constant dense<0.000000e+00> : vector<16x16xf32>
    %78 = tpu.matmul %75, %77, %cst_50 {dimension_numbers = #tpu.dot_dimension_numbers<[1], [1], [0], [0], [0, 0, 1, 0], [], []>} : vector<16x32xf32>, vector<16x32xf32>, vector<16x16xf32> -> vector<16x16xf32>
    %79 = arith.addf %78, %8 : vector<16x16xf32>
    %cst_51 = arith.constant dense<0xFF800000> : vector<16xf32>
    %80 = vector.multi_reduction <maximumf>, %79, %cst_51 [1] : vector<16x16xf32> to vector<16xf32>
    %81 = vector.shape_cast %80 : vector<16xf32> to vector<16x1xf32>
    %82 = vector.broadcast %81 : vector<16x1xf32> to vector<16x16xf32>
    %83 = arith.subf %79, %82 : vector<16x16xf32>
    %84 = math.exp %83 : vector<16x16xf32>
    %cst_52 = arith.constant dense<0.000000e+00> : vector<16xf32>
    %85 = vector.multi_reduction <add>, %84, %cst_52 [1] : vector<16x16xf32> to vector<16xf32>
    %86 = vector.shape_cast %85 : vector<16xf32> to vector<16x1xf32>
    %87 = tpu.reciprocal %86 : vector<16x1xf32> -> vector<16x1xf32>
    %88 = vector.broadcast %87 : vector<16x1xf32> to vector<16x16xf32>
    %89 = arith.mulf %84, %88 : vector<16x16xf32>
    %90 = vector.extract_strided_slice %26 {offsets = [0, 1], sizes = [16, 1], strides = [1, 1]} : vector<16x4xf32> to vector<16x1xf32>
    %91 = tpu.reciprocal %90 : vector<16x1xf32> -> vector<16x1xf32>
    %cst_53 = arith.constant -5.000000e-01 : f32
    %92 = vector.broadcast %cst_53 : f32 to vector<16x1xf32>
    %93 = arith.mulf %92, %91 : vector<16x1xf32>
    %94 = arith.mulf %93, %91 : vector<16x1xf32>
    %cst_54 = arith.constant 0.398942292 : f32
    %95 = vector.broadcast %cst_54 : f32 to vector<16x1xf32>
    %96 = arith.mulf %91, %95 : vector<16x1xf32>
    %97 = vector.broadcast %94 : vector<16x1xf32> to vector<16x16xf32>
    %98 = arith.mulf %11, %97 : vector<16x16xf32>
    %99 = math.exp %98 : vector<16x16xf32>
    %100 = vector.broadcast %96 : vector<16x1xf32> to vector<16x16xf32>
    %101 = arith.mulf %100, %99 : vector<16x16xf32>
    %c0_55 = arith.constant 0 : index
    %c0_56 = arith.constant 0 : index
    %c1_57 = arith.constant 1 : index
    %c0_58 = arith.constant 0 : index
    %102 = vector.load %arg4[%c0_55, %c0_56, %c1_57, %c0_58] : memref<1x16x4x32xf32, #tpu.memory_space<vmem>>, vector<1x16x1x32xf32>
    %103 = vector.shape_cast %102 : vector<1x16x1x32xf32> to vector<16x32xf32>
    %cst_59 = arith.constant dense<0.000000e+00> : vector<16x32xf32>
    %104 = tpu.matmul %89, %103, %cst_59 {dimension_numbers = #tpu.dot_dimension_numbers<[1], [0], [0], [1], [0, 0, 1, 1], [], []>} : vector<16x16xf32>, vector<16x32xf32>, vector<16x32xf32> -> vector<16x32xf32>
    %c0_60 = arith.constant 0 : index
    %c1_61 = arith.constant 1 : index
    %c0_62 = arith.constant 0 : index
    %c0_63 = arith.constant 0 : index
    %105 = vector.load %arg7[%c0_60, %c1_61, %c0_62, %c0_63] : memref<1x4x16x16xf32, #tpu.memory_space<vmem>>, vector<1x1x16x16xf32>
    %106 = vector.shape_cast %105 : vector<1x1x16x16xf32> to vector<16x16xf32>
    %107 = vector.shape_cast %89 : vector<16x16xf32> to vector<1x1x16x16xf32>
    tpu.vector_store %arg7[%c0_60, %c1_61, %c0_62, %c0_63], %107 {strides = array<i32>} : memref<1x4x16x16xf32, #tpu.memory_space<vmem>>, vector<1x1x16x16xf32>,
    %c0_64 = arith.constant 0 : index
    %c1_65 = arith.constant 1 : index
    %c0_66 = arith.constant 0 : index
    %c0_67 = arith.constant 0 : index
    %108 = vector.load %arg8[%c0_64, %c1_65, %c0_66, %c0_67] : memref<1x4x16x16xf32, #tpu.memory_space<vmem>>, vector<1x1x16x16xf32>
    %109 = vector.shape_cast %108 : vector<1x1x16x16xf32> to vector<16x16xf32>
    %110 = vector.shape_cast %101 : vector<16x16xf32> to vector<1x1x16x16xf32>
    tpu.vector_store %arg8[%c0_64, %c1_65, %c0_66, %c0_67], %110 {strides = array<i32>} : memref<1x4x16x16xf32, #tpu.memory_space<vmem>>, vector<1x1x16x16xf32>,
    %c0_68 = arith.constant 0 : index
    %c0_69 = arith.constant 0 : index
    %c1_70 = arith.constant 1 : index
    %c0_71 = arith.constant 0 : index
    %111 = vector.load %arg6[%c0_68, %c0_69, %c1_70, %c0_71] : memref<1x16x4x32xf32, #tpu.memory_space<vmem>>, vector<1x16x1x32xf32>
    %112 = vector.shape_cast %111 : vector<1x16x1x32xf32> to vector<16x32xf32>
    %113 = vector.shape_cast %104 : vector<16x32xf32> to vector<1x16x1x32xf32>
    tpu.vector_store %arg6[%c0_68, %c0_69, %c1_70, %c0_71], %113 {strides = array<i32>} : memref<1x16x4x32xf32, #tpu.memory_space<vmem>>, vector<1x16x1x32xf32>,
    %c0_72 = arith.constant 0 : index
    %c0_73 = arith.constant 0 : index
    %c2 = arith.constant 2 : index
    %c0_74 = arith.constant 0 : index
    %114 = vector.load %arg2[%c0_72, %c0_73, %c2, %c0_74] : memref<1x16x4x32xf32, #tpu.memory_space<vmem>>, vector<1x16x1x32xf32>
    %115 = vector.shape_cast %114 : vector<1x16x1x32xf32> to vector<16x32xf32>
    %cst_75 = arith.constant 0.176776692 : f32
    %116 = vector.broadcast %cst_75 : f32 to vector<16x32xf32>
    %117 = arith.mulf %115, %116 : vector<16x32xf32>
    %c0_76 = arith.constant 0 : index
    %c0_77 = arith.constant 0 : index
    %c2_78 = arith.constant 2 : index
    %c0_79 = arith.constant 0 : index
    %118 = vector.load %arg3[%c0_76, %c0_77, %c2_78, %c0_79] : memref<1x16x4x32xf32, #tpu.memory_space<vmem>>, vector<1x16x1x32xf32>
    %119 = vector.shape_cast %118 : vector<1x16x1x32xf32> to vector<16x32xf32>
    %cst_80 = arith.constant dense<0.000000e+00> : vector<16x16xf32>
    %120 = tpu.matmul %117, %119, %cst_80 {dimension_numbers = #tpu.dot_dimension_numbers<[1], [1], [0], [0], [0, 0, 1, 0], [], []>} : vector<16x32xf32>, vector<16x32xf32>, vector<16x16xf32> -> vector<16x16xf32>
    %121 = arith.addf %120, %8 : vector<16x16xf32>
    %cst_81 = arith.constant dense<0xFF800000> : vector<16xf32>
    %122 = vector.multi_reduction <maximumf>, %121, %cst_81 [1] : vector<16x16xf32> to vector<16xf32>
    %123 = vector.shape_cast %122 : vector<16xf32> to vector<16x1xf32>
    %124 = vector.broadcast %123 : vector<16x1xf32> to vector<16x16xf32>
    %125 = arith.subf %121, %124 : vector<16x16xf32>
    %126 = math.exp %125 : vector<16x16xf32>
    %cst_82 = arith.constant dense<0.000000e+00> : vector<16xf32>
    %127 = vector.multi_reduction <add>, %126, %cst_82 [1] : vector<16x16xf32> to vector<16xf32>
    %128 = vector.shape_cast %127 : vector<16xf32> to vector<16x1xf32>
    %129 = tpu.reciprocal %128 : vector<16x1xf32> -> vector<16x1xf32>
    %130 = vector.broadcast %129 : vector<16x1xf32> to vector<16x16xf32>
    %131 = arith.mulf %126, %130 : vector<16x16xf32>
    %132 = vector.extract_strided_slice %26 {offsets = [0, 2], sizes = [16, 1], strides = [1, 1]} : vector<16x4xf32> to vector<16x1xf32>
    %133 = tpu.reciprocal %132 : vector<16x1xf32> -> vector<16x1xf32>
    %cst_83 = arith.constant -5.000000e-01 : f32
    %134 = vector.broadcast %cst_83 : f32 to vector<16x1xf32>
    %135 = arith.mulf %134, %133 : vector<16x1xf32>
    %136 = arith.mulf %135, %133 : vector<16x1xf32>
    %cst_84 = arith.constant 0.398942292 : f32
    %137 = vector.broadcast %cst_84 : f32 to vector<16x1xf32>
    %138 = arith.mulf %133, %137 : vector<16x1xf32>
    %139 = vector.broadcast %136 : vector<16x1xf32> to vector<16x16xf32>
    %140 = arith.mulf %11, %139 : vector<16x16xf32>
    %141 = math.exp %140 : vector<16x16xf32>
    %142 = vector.broadcast %138 : vector<16x1xf32> to vector<16x16xf32>
    %143 = arith.mulf %142, %141 : vector<16x16xf32>
    %c0_85 = arith.constant 0 : index
    %c0_86 = arith.constant 0 : index
    %c2_87 = arith.constant 2 : index
    %c0_88 = arith.constant 0 : index
    %144 = vector.load %arg4[%c0_85, %c0_86, %c2_87, %c0_88] : memref<1x16x4x32xf32, #tpu.memory_space<vmem>>, vector<1x16x1x32xf32>
    %145 = vector.shape_cast %144 : vector<1x16x1x32xf32> to vector<16x32xf32>
    %cst_89 = arith.constant dense<0.000000e+00> : vector<16x32xf32>
    %146 = tpu.matmul %131, %145, %cst_89 {dimension_numbers = #tpu.dot_dimension_numbers<[1], [0], [0], [1], [0, 0, 1, 1], [], []>} : vector<16x16xf32>, vector<16x32xf32>, vector<16x32xf32> -> vector<16x32xf32>
    %c0_90 = arith.constant 0 : index
    %c2_91 = arith.constant 2 : index
    %c0_92 = arith.constant 0 : index
    %c0_93 = arith.constant 0 : index
    %147 = vector.load %arg7[%c0_90, %c2_91, %c0_92, %c0_93] : memref<1x4x16x16xf32, #tpu.memory_space<vmem>>, vector<1x1x16x16xf32>
    %148 = vector.shape_cast %147 : vector<1x1x16x16xf32> to vector<16x16xf32>
    %149 = vector.shape_cast %131 : vector<16x16xf32> to vector<1x1x16x16xf32>
    tpu.vector_store %arg7[%c0_90, %c2_91, %c0_92, %c0_93], %149 {strides = array<i32>} : memref<1x4x16x16xf32, #tpu.memory_space<vmem>>, vector<1x1x16x16xf32>,
    %c0_94 = arith.constant 0 : index
    %c2_95 = arith.constant 2 : index
    %c0_96 = arith.constant 0 : index
    %c0_97 = arith.constant 0 : index
    %150 = vector.load %arg8[%c0_94, %c2_95, %c0_96, %c0_97] : memref<1x4x16x16xf32, #tpu.memory_space<vmem>>, vector<1x1x16x16xf32>
    %151 = vector.shape_cast %150 : vector<1x1x16x16xf32> to vector<16x16xf32>
    %152 = vector.shape_cast %143 : vector<16x16xf32> to vector<1x1x16x16xf32>
    tpu.vector_store %arg8[%c0_94, %c2_95, %c0_96, %c0_97], %152 {strides = array<i32>} : memref<1x4x16x16xf32, #tpu.memory_space<vmem>>, vector<1x1x16x16xf32>,
    %c0_98 = arith.constant 0 : index
    %c0_99 = arith.constant 0 : index
    %c2_100 = arith.constant 2 : index
    %c0_101 = arith.constant 0 : index
    %153 = vector.load %arg6[%c0_98, %c0_99, %c2_100, %c0_101] : memref<1x16x4x32xf32, #tpu.memory_space<vmem>>, vector<1x16x1x32xf32>
    %154 = vector.shape_cast %153 : vector<1x16x1x32xf32> to vector<16x32xf32>
    %155 = vector.shape_cast %146 : vector<16x32xf32> to vector<1x16x1x32xf32>
    tpu.vector_store %arg6[%c0_98, %c0_99, %c2_100, %c0_101], %155 {strides = array<i32>} : memref<1x16x4x32xf32, #tpu.memory_space<vmem>>, vector<1x16x1x32xf32>,
    %c0_102 = arith.constant 0 : index
    %c0_103 = arith.constant 0 : index
    %c3 = arith.constant 3 : index
    %c0_104 = arith.constant 0 : index
    %156 = vector.load %arg2[%c0_102, %c0_103, %c3, %c0_104] : memref<1x16x4x32xf32, #tpu.memory_space<vmem>>, vector<1x16x1x32xf32>
    %157 = vector.shape_cast %156 : vector<1x16x1x32xf32> to vector<16x32xf32>
    %cst_105 = arith.constant 0.176776692 : f32
    %158 = vector.broadcast %cst_105 : f32 to vector<16x32xf32>
    %159 = arith.mulf %157, %158 : vector<16x32xf32>
    %c0_106 = arith.constant 0 : index
    %c0_107 = arith.constant 0 : index
    %c3_108 = arith.constant 3 : index
    %c0_109 = arith.constant 0 : index
    %160 = vector.load %arg3[%c0_106, %c0_107, %c3_108, %c0_109] : memref<1x16x4x32xf32, #tpu.memory_space<vmem>>, vector<1x16x1x32xf32>
    %161 = vector.shape_cast %160 : vector<1x16x1x32xf32> to vector<16x32xf32>
    %cst_110 = arith.constant dense<0.000000e+00> : vector<16x16xf32>
    %162 = tpu.matmul %159, %161, %cst_110 {dimension_numbers = #tpu.dot_dimension_numbers<[1], [1], [0], [0], [0, 0, 1, 0], [], []>} : vector<16x32xf32>, vector<16x32xf32>, vector<16x16xf32> -> vector<16x16xf32>
    %163 = arith.addf %162, %8 : vector<16x16xf32>
    %cst_111 = arith.constant dense<0xFF800000> : vector<16xf32>
    %164 = vector.multi_reduction <maximumf>, %163, %cst_111 [1] : vector<16x16xf32> to vector<16xf32>
    %165 = vector.shape_cast %164 : vector<16xf32> to vector<16x1xf32>
    %166 = vector.broadcast %165 : vector<16x1xf32> to vector<16x16xf32>
    %167 = arith.subf %163, %166 : vector<16x16xf32>
    %168 = math.exp %167 : vector<16x16xf32>
    %cst_112 = arith.constant dense<0.000000e+00> : vector<16xf32>
    %169 = vector.multi_reduction <add>, %168, %cst_112 [1] : vector<16x16xf32> to vector<16xf32>
    %170 = vector.shape_cast %169 : vector<16xf32> to vector<16x1xf32>
    %171 = tpu.reciprocal %170 : vector<16x1xf32> -> vector<16x1xf32>
    %172 = vector.broadcast %171 : vector<16x1xf32> to vector<16x16xf32>
    %173 = arith.mulf %168, %172 : vector<16x16xf32>
    %174 = vector.extract_strided_slice %26 {offsets = [0, 3], sizes = [16, 1], strides = [1, 1]} : vector<16x4xf32> to vector<16x1xf32>
    %175 = tpu.reciprocal %174 : vector<16x1xf32> -> vector<16x1xf32>
    %cst_113 = arith.constant -5.000000e-01 : f32
    %176 = vector.broadcast %cst_113 : f32 to vector<16x1xf32>
    %177 = arith.mulf %176, %175 : vector<16x1xf32>
    %178 = arith.mulf %177, %175 : vector<16x1xf32>
    %cst_114 = arith.constant 0.398942292 : f32
    %179 = vector.broadcast %cst_114 : f32 to vector<16x1xf32>
    %180 = arith.mulf %175, %179 : vector<16x1xf32>
    %181 = vector.broadcast %178 : vector<16x1xf32> to vector<16x16xf32>
    %182 = arith.mulf %11, %181 : vector<16x16xf32>
    %183 = math.exp %182 : vector<16x16xf32>
    %184 = vector.broadcast %180 : vector<16x1xf32> to vector<16x16xf32>
    %185 = arith.mulf %184, %183 : vector<16x16xf32>
    %c0_115 = arith.constant 0 : index
    %c0_116 = arith.constant 0 : index
    %c3_117 = arith.constant 3 : index
    %c0_118 = arith.constant 0 : index
    %186 = vector.load %arg4[%c0_115, %c0_116, %c3_117, %c0_118] : memref<1x16x4x32xf32, #tpu.memory_space<vmem>>, vector<1x16x1x32xf32>
    %187 = vector.shape_cast %186 : vector<1x16x1x32xf32> to vector<16x32xf32>
    %cst_119 = arith.constant dense<0.000000e+00> : vector<16x32xf32>
    %188 = tpu.matmul %173, %187, %cst_119 {dimension_numbers = #tpu.dot_dimension_numbers<[1], [0], [0], [1], [0, 0, 1, 1], [], []>} : vector<16x16xf32>, vector<16x32xf32>, vector<16x32xf32> -> vector<16x32xf32>
    %c0_120 = arith.constant 0 : index
    %c3_121 = arith.constant 3 : index
    %c0_122 = arith.constant 0 : index
    %c0_123 = arith.constant 0 : index
    %189 = vector.load %arg7[%c0_120, %c3_121, %c0_122, %c0_123] : memref<1x4x16x16xf32, #tpu.memory_space<vmem>>, vector<1x1x16x16xf32>
    %190 = vector.shape_cast %189 : vector<1x1x16x16xf32> to vector<16x16xf32>
    %191 = vector.shape_cast %173 : vector<16x16xf32> to vector<1x1x16x16xf32>
    tpu.vector_store %arg7[%c0_120, %c3_121, %c0_122, %c0_123], %191 {strides = array<i32>} : memref<1x4x16x16xf32, #tpu.memory_space<vmem>>, vector<1x1x16x16xf32>,
    %c0_124 = arith.constant 0 : index
    %c3_125 = arith.constant 3 : index
    %c0_126 = arith.constant 0 : index
    %c0_127 = arith.constant 0 : index
    %192 = vector.load %arg8[%c0_124, %c3_125, %c0_126, %c0_127] : memref<1x4x16x16xf32, #tpu.memory_space<vmem>>, vector<1x1x16x16xf32>
    %193 = vector.shape_cast %192 : vector<1x1x16x16xf32> to vector<16x16xf32>
    %194 = vector.shape_cast %185 : vector<16x16xf32> to vector<1x1x16x16xf32>
    tpu.vector_store %arg8[%c0_124, %c3_125, %c0_126, %c0_127], %194 {strides = array<i32>} : memref<1x4x16x16xf32, #tpu.memory_space<vmem>>, vector<1x1x16x16xf32>,
    %c0_128 = arith.constant 0 : index
    %c0_129 = arith.constant 0 : index
    %c3_130 = arith.constant 3 : index
    %c0_131 = arith.constant 0 : index
    %195 = vector.load %arg6[%c0_128, %c0_129, %c3_130, %c0_131] : memref<1x16x4x32xf32, #tpu.memory_space<vmem>>, vector<1x16x1x32xf32>
    %196 = vector.shape_cast %195 : vector<1x16x1x32xf32> to vector<16x32xf32>
    %197 = vector.shape_cast %188 : vector<16x32xf32> to vector<1x16x1x32xf32>
    tpu.vector_store %arg6[%c0_128, %c0_129, %c3_130, %c0_131], %197 {strides = array<i32>} : memref<1x16x4x32xf32, #tpu.memory_space<vmem>>, vector<1x16x1x32xf32>,
    return
  }
  func.func @transform_0(%arg0: i32, %arg1: i32) -> (i32, i32, i32, i32) {
    %c0_i32 = arith.constant 0 : i32
    %c0_i32_0 = arith.constant 0 : i32
    %c0_i32_1 = arith.constant 0 : i32
    return %arg0, %arg1, %c0_i32, %c0_i32_0 : i32, i32, i32, i32
  }
  func.func @transform_1(%arg0: i32, %arg1: i32) -> (i32, i32, i32, i32) {
    %c0_i32 = arith.constant 0 : i32
    %c0_i32_0 = arith.constant 0 : i32
    %c0_i32_1 = arith.constant 0 : i32
    %c0_i32_2 = arith.constant 0 : i32
    return %arg0, %c0_i32, %c0_i32_0, %c0_i32_1 : i32, i32, i32, i32
  }
  func.func @transform_2(%arg0: i32, %arg1: i32) -> (i32, i32, i32, i32) {
    %c0_i32 = arith.constant 0 : i32
    %c0_i32_0 = arith.constant 0 : i32
    %c0_i32_1 = arith.constant 0 : i32
    %c0_i32_2 = arith.constant 0 : i32
    return %arg0, %c0_i32, %c0_i32_0, %c0_i32_1 : i32, i32, i32, i32
  }
  func.func @transform_3(%arg0: i32, %arg1: i32) -> (i32, i32, i32) {
    %c0_i32 = arith.constant 0 : i32
    %c0_i32_0 = arith.constant 0 : i32
    return %arg0, %arg1, %c0_i32 : i32, i32, i32
  }
  func.func @transform_4(%arg0: i32, %arg1: i32) -> (i32, i32, i32, i32) {
    %c0_i32 = arith.constant 0 : i32
    %c0_i32_0 = arith.constant 0 : i32
    %c0_i32_1 = arith.constant 0 : i32
    return %arg0, %arg1, %c0_i32, %c0_i32_0 : i32, i32, i32, i32
  }
  func.func @transform_5(%arg0: i32, %arg1: i32) -> (i32, i32, i32, i32) {
    %c0_i32 = arith.constant 0 : i32
    %c0_i32_0 = arith.constant 0 : i32
    %c0_i32_1 = arith.constant 0 : i32
    return %arg0, %c0_i32, %arg1, %c0_i32_0 : i32, i32, i32, i32
  }
  func.func @transform_6(%arg0: i32, %arg1: i32) -> (i32, i32, i32, i32) {
    %c0_i32 = arith.constant 0 : i32
    %c0_i32_0 = arith.constant 0 : i32
    %c0_i32_1 = arith.constant 0 : i32
    return %arg0, %c0_i32, %arg1, %c0_i32_0 : i32, i32, i32, i32
  }
  func.func @transform_7(%arg0: i32, %arg1: i32) -> (i32, i32, i32) {
    %c0_i32 = arith.constant 0 : i32
    %c0_i32_0 = arith.constant 0 : i32
    return %arg0, %arg1, %c0_i32 : i32, i32, i32
  }
}

</mosaic_0001>

<llo_original>
// kernel: anomaly_attention.1
$region0: #{anomaly_attention.1}
  #allocation0 [shape = 'u32[]', space=smem, size = 0x4, offset = 0x4, fixed_abs, tag = 'smem constant byte address 0x4 - core index']
  #allocation1 [shape = 'u32[144,128]{1,0:T(1,128)}', space=vmem, size = 0x12000, scoped, tag = 'internal scratch']
  %s0 = inlined_call_operand.hbm [shape: f32[2,16,4,32], index: 0, kind: input, shape index: {}]
  %s1 = inlined_call_operand.hbm [shape: f32[2,16,4,32], index: 1, kind: input, shape index: {}]
  %s2 = inlined_call_operand.hbm [shape: f32[2,16,4,32], index: 2, kind: input, shape index: {}]
  %s3 = inlined_call_operand.vmem [shape: f32[2,16,4], index: 3, kind: input, shape index: {}]
  %s4 = inlined_call_operand.hbm [shape: f32[2,16,4,32], index: 4, kind: output, shape index: {0}]
  %s5 = inlined_call_operand.hbm [shape: f32[2,4,16,16], index: 5, kind: output, shape index: {1}]
  %s6 = inlined_call_operand.hbm [shape: f32[2,4,16,16], index: 6, kind: output, shape index: {2}]
  %s7 = inlined_call_operand.vmem [shape: f32[2,16,4], index: 7, kind: output, shape index: {3}]
  %8 = xla_tuple %s4, %s5, %s6, %s7
  %s9 = sld [smem:[#allocation0]]
  $region85: #{anomaly_attention.1} parent=0
    _
  %s11 = ssub.s32 1, %s9
  %s12 = scalar_select 0, %s11, %s9
  $region1: #{anomaly_attention.1} parent=0
    #allocation2 [shape = 'u8[65536]{0}', space=vmem, size = 0x10000, scoped, tag = 'input window, operand 0']
    #allocation3 [shape = 's32[2]{0}', space=sflag, size = 0x8, scoped, tag = 'scoped memory for anomaly_attention.1']
    #allocation4 [shape = 's32[2]{0}', space=sflag, size = 0x8, scoped, tag = 'scoped memory for anomaly_attention.1']
    #allocation5 [shape = 'u8[65536]{0}', space=vmem, size = 0x10000, scoped, tag = 'input window, operand 1']
    #allocation6 [shape = 's32[2]{0}', space=sflag, size = 0x8, scoped, tag = 'scoped memory for anomaly_attention.1']
    #allocation7 [shape = 'u8[65536]{0}', space=vmem, size = 0x10000, scoped, tag = 'input window, operand 2']
    #allocation8 [shape = 'u8[65536]{0}', space=vmem, size = 0x10000, scoped, tag = 'output window, operand 0']
    #allocation9 [shape = 'u8[65536]{0}', space=vmem, size = 0x10000, scoped, tag = 'output window, operand 1']
    #allocation10 [shape = 's32[2]{0}', space=sflag, size = 0x8, scoped, tag = 'scoped memory for anomaly_attention.1']
    #allocation11 [shape = 'u8[65536]{0}', space=vmem, size = 0x10000, scoped, tag = 'output window, operand 2']
    %13 = vsyncpa [#allocation3], 0
    %s14 = scalar_lea.sflag [#allocation3], 1
    %15 = vsyncpa %s14, 0
    %16 = vsyncpa [#allocation6], 0
    %s17 = scalar_lea.sflag [#allocation6], 1
    %18 = vsyncpa %s17, 0
    %19 = vsyncpa [#allocation4], 0
    %s20 = scalar_lea.sflag [#allocation4], 1
    %21 = vsyncpa %s20, 0
    %22 = vsyncpa [#allocation10], 0
    %s23 = scalar_lea.sflag [#allocation10], 1
    %24 = vsyncpa %s23, 0
    loop: start=0, step=1, limit=4
    $region2: #{anomaly_attention.1} parent=1 // loop_pre_header
      _
    $region3: #{anomaly_attention.1} parent=1 // loop_header
      %s26 = sphi 0, %s30
      %p27 = scmp.ge.s32.totalorder %s26, 4
      %s33 = sphi 0, %s45
      %s34 = sphi 0, %s41
      %s35 = sphi 0, %s33
      %s36 = sphi 0, %s34
      %s37 = sphi 0, %s35
      %s38 = sphi 0, %s36
      %s50 = sphi 0, %s52
      %s53 = sphi 0, %s50
      %s54 = sphi 0, %s53
      %s70 = sphi 0, %s54
      %s76 = sphi 0, %s78
      %s79 = sphi 0, %s76
      %s80 = sphi 0, %s79
      %s96 = sphi 0, %s80
      %s102 = sphi 0, %s104
      %s105 = sphi 0, %s102
      %s106 = sphi 0, %s105
      %s122 = sphi 0, %s106
      %s130 = sphi 0, %s132
      %s133 = sphi 0, %s130
      %s134 = sphi 0, %s133
      %s150 = sphi 0, %s134
      %s158 = sphi 0, %s160
      %s161 = sphi 0, %s158
      %s162 = sphi 0, %s161
      %s178 = sphi 0, %s162
      %s186 = sphi 0, %s188
      %s189 = sphi 0, %s186
      %s190 = sphi 0, %s189
      %s206 = sphi 0, %s190
      %s214 = sphi 0, %s216
      %s217 = sphi 0, %s214
      %s218 = sphi 0, %s217
      %s234 = sphi 0, %s218
      %s242 = sphi 0, %s244
      %s245 = sphi 0, %s242
      %s246 = sphi 0, %s245
      %s262 = sphi 0, %s246
    $region4: #{anomaly_attention.1} parent=1 // loop_header_branch
      %29 = sbr.rel (%p27) target = $region8
    $region5: #{anomaly_attention.1} parent=1 // loop_body
      %s31 = ssub.s32 %s26, 1
      %s32 = ssub.s32 %s26, 2
      %s39 = sadd.s32 1, %s34
      %p40 = scmp.ge.s32.totalorder %s39, 1
      %s41 = scalar_select %p40, 0, %s39
      %s42 = sadd.s32 1, %s33
      %s43 = scalar_select %p40, %s42, %s33
      %p44 = scmp.ge.s32.totalorder %s43, 2
      %s45 = scalar_select %p44, 0, %s43
      %s46 = ssub.s32 %s33, %s45
      %s47 = ssub.s32 %s34, %s41
      %s48 = sor.u32 %s46, %s47
      %p49 = scmp.eq.s32.totalorder %s48, 0
      %s51 = sadd.s32 %s50, 1
      %s52 = scalar_select %p49, %s50, %s51
      %p55 = pneg %p49
      %p56 = scmp.eq.s32.totalorder %s26, 1
      %p57 = por %p55, %p56
      %p58 = scmp.ne.s32.totalorder %s50, %s53
      %p59 = scmp.eq.s32.totalorder %s26, 0
      %p60 = por %p58, %p59
      %p61 = scmp.ne.s32.totalorder %s50, %s53
      %p62 = scmp.eq.s32.totalorder %s31, 1
      %p63 = por %p61, %p62
      %p64 = scmp.ne.s32.totalorder %s53, %s54
      %p65 = scmp.eq.s32.totalorder %s31, 0
      %p66 = por %p64, %p65
      %p67 = scmp.ne.s32.totalorder %s53, %s54
      %p68 = scmp.eq.s32.totalorder %s32, 1
      %p69 = por %p67, %p68
      %p71 = scmp.ne.s32.totalorder %s54, %s70
      %p72 = scmp.eq.s32.totalorder %s32, 0
      %p73 = por %p71, %p72
      %s74 = ssub.s32 %s33, %s45
      %p75 = scmp.eq.s32.totalorder %s74, 0
      %s77 = sadd.s32 %s76, 1
      %s78 = scalar_select %p75, %s76, %s77
      %p81 = pneg %p75
      %p82 = scmp.eq.s32.totalorder %s26, 1
      %p83 = por %p81, %p82
      %p84 = scmp.ne.s32.totalorder %s76, %s79
      %p85 = scmp.eq.s32.totalorder %s26, 0
      %p86 = por %p84, %p85
      %p87 = scmp.ne.s32.totalorder %s76, %s79
      %p88 = scmp.eq.s32.totalorder %s31, 1
      %p89 = por %p87, %p88
      %p90 = scmp.ne.s32.totalorder %s79, %s80
      %p91 = scmp.eq.s32.totalorder %s31, 0
      %p92 = por %p90, %p91
      %p93 = scmp.ne.s32.totalorder %s79, %s80
      %p94 = scmp.eq.s32.totalorder %s32, 1
      %p95 = por %p93, %p94
      %p97 = scmp.ne.s32.totalorder %s80, %s96
      %p98 = scmp.eq.s32.totalorder %s32, 0
      %p99 = por %p97, %p98
      %s100 = ssub.s32 %s33, %s45
      %p101 = scmp.eq.s32.totalorder %s100, 0
      %s103 = sadd.s32 %s102, 1
      %s104 = scalar_select %p101, %s102, %s103
      %p107 = pneg %p101
      %p108 = scmp.eq.s32.totalorder %s26, 1
      %p109 = por %p107, %p108
      %p110 = scmp.ne.s32.totalorder %s102, %s105
      %p111 = scmp.eq.s32.totalorder %s26, 0
      %p112 = por %p110, %p111
      %p113 = scmp.ne.s32.totalorder %s102, %s105
      %p114 = scmp.eq.s32.totalorder %s31, 1
      %p115 = por %p113, %p114
      %p116 = scmp.ne.s32.totalorder %s105, %s106
      %p117 = scmp.eq.s32.totalorder %s31, 0
      %p118 = por %p116, %p117
      %p119 = scmp.ne.s32.totalorder %s105, %s106
      %p120 = scmp.eq.s32.totalorder %s32, 1
      %p121 = por %p119, %p120
      %p123 = scmp.ne.s32.totalorder %s106, %s122
      %p124 = scmp.eq.s32.totalorder %s32, 0
      %p125 = por %p123, %p124
      %s126 = ssub.s32 %s33, %s45
      %s127 = ssub.s32 %s34, %s41
      %s128 = sor.u32 %s126, %s127
      %p129 = scmp.eq.s32.totalorder %s128, 0
      %s131 = sadd.s32 %s130, 1
      %s132 = scalar_select %p129, %s130, %s131
      %p135 = pneg %p129
      %p136 = scmp.eq.s32.totalorder %s26, 1
      %p137 = por %p135, %p136
      %p138 = scmp.ne.s32.totalorder %s130, %s133
      %p139 = scmp.eq.s32.totalorder %s26, 0
      %p140 = por %p138, %p139
      %p141 = scmp.ne.s32.totalorder %s130, %s133
      %p142 = scmp.eq.s32.totalorder %s31, 1
      %p143 = por %p141, %p142
      %p144 = scmp.ne.s32.totalorder %s133, %s134
      %p145 = scmp.eq.s32.totalorder %s31, 0
      %p146 = por %p144, %p145
      %p147 = scmp.ne.s32.totalorder %s133, %s134
      %p148 = scmp.eq.s32.totalorder %s32, 1
      %p149 = por %p147, %p148
      %p151 = scmp.ne.s32.totalorder %s134, %s150
      %p152 = scmp.eq.s32.totalorder %s32, 0
      %p153 = por %p151, %p152
      %s154 = ssub.s32 %s33, %s45
      %s155 = ssub.s32 %s34, %s41
      %s156 = sor.u32 %s154, %s155
      %p157 = scmp.eq.s32.totalorder %s156, 0
      %s159 = sadd.s32 %s158, 1
      %s160 = scalar_select %p157, %s158, %s159
      %p163 = pneg %p157
      %p164 = scmp.eq.s32.totalorder %s26, 1
      %p165 = por %p163, %p164
      %p166 = scmp.ne.s32.totalorder %s158, %s161
      %p167 = scmp.eq.s32.totalorder %s26, 0
      %p168 = por %p166, %p167
      %p169 = scmp.ne.s32.totalorder %s158, %s161
      %p170 = scmp.eq.s32.totalorder %s31, 1
      %p171 = por %p169, %p170
      %p172 = scmp.ne.s32.totalorder %s161, %s162
      %p173 = scmp.eq.s32.totalorder %s31, 0
      %p174 = por %p172, %p173
      %p175 = scmp.ne.s32.totalorder %s161, %s162
      %p176 = scmp.eq.s32.totalorder %s32, 1
      %p177 = por %p175, %p176
      %p179 = scmp.ne.s32.totalorder %s162, %s178
      %p180 = scmp.eq.s32.totalorder %s32, 0
      %p181 = por %p179, %p180
      %s182 = ssub.s32 %s33, %s45
      %s183 = ssub.s32 %s34, %s41
      %s184 = sor.u32 %s182, %s183
      %p185 = scmp.eq.s32.totalorder %s184, 0
      %s187 = sadd.s32 %s186, 1
      %s188 = scalar_select %p185, %s186, %s187
      %p191 = pneg %p185
      %p192 = scmp.eq.s32.totalorder %s26, 1
      %p193 = por %p191, %p192
      %p194 = scmp.ne.s32.totalorder %s186, %s189
      %p195 = scmp.eq.s32.totalorder %s26, 0
      %p196 = por %p194, %p195
      %p197 = scmp.ne.s32.totalorder %s186, %s189
      %p198 = scmp.eq.s32.totalorder %s31, 1
      %p199 = por %p197, %p198
      %p200 = scmp.ne.s32.totalorder %s189, %s190
      %p201 = scmp.eq.s32.totalorder %s31, 0
      %p202 = por %p200, %p201
      %p203 = scmp.ne.s32.totalorder %s189, %s190
      %p204 = scmp.eq.s32.totalorder %s32, 1
      %p205 = por %p203, %p204
      %p207 = scmp.ne.s32.totalorder %s190, %s206
      %p208 = scmp.eq.s32.totalorder %s32, 0
      %p209 = por %p207, %p208
      %s210 = ssub.s32 %s33, %s45
      %s211 = ssub.s32 %s34, %s41
      %s212 = sor.u32 %s210, %s211
      %p213 = scmp.eq.s32.totalorder %s212, 0
      %s215 = sadd.s32 %s214, 1
      %s216 = scalar_select %p213, %s214, %s215
      %p219 = pneg %p213
      %p220 = scmp.eq.s32.totalorder %s26, 1
      %p221 = por %p219, %p220
      %p222 = scmp.ne.s32.totalorder %s214, %s217
      %p223 = scmp.eq.s32.totalorder %s26, 0
      %p224 = por %p222, %p223
      %p225 = scmp.ne.s32.totalorder %s214, %s217
      %p226 = scmp.eq.s32.totalorder %s31, 1
      %p227 = por %p225, %p226
      %p228 = scmp.ne.s32.totalorder %s217, %s218
      %p229 = scmp.eq.s32.totalorder %s31, 0
      %p230 = por %p228, %p229
      %p231 = scmp.ne.s32.totalorder %s217, %s218
      %p232 = scmp.eq.s32.totalorder %s32, 1
      %p233 = por %p231, %p232
      %p235 = scmp.ne.s32.totalorder %s218, %s234
      %p236 = scmp.eq.s32.totalorder %s32, 0
      %p237 = por %p235, %p236
      %s238 = ssub.s32 %s33, %s45
      %s239 = ssub.s32 %s34, %s41
      %s240 = sor.u32 %s238, %s239
      %p241 = scmp.eq.s32.totalorder %s240, 0
      %s243 = sadd.s32 %s242, 1
      %s244 = scalar_select %p241, %s242, %s243
      %p247 = pneg %p241
      %p248 = scmp.eq.s32.totalorder %s26, 1
      %p249 = por %p247, %p248
      %p250 = scmp.ne.s32.totalorder %s242, %s245
      %p251 = scmp.eq.s32.totalorder %s26, 0
      %p252 = por %p250, %p251
      %p253 = scmp.ne.s32.totalorder %s242, %s245
      %p254 = scmp.eq.s32.totalorder %s31, 1
      %p255 = por %p253, %p254
      %p256 = scmp.ne.s32.totalorder %s245, %s246
      %p257 = scmp.eq.s32.totalorder %s31, 0
      %p258 = por %p256, %p257
      %p259 = scmp.ne.s32.totalorder %s245, %s246
      %p260 = scmp.eq.s32.totalorder %s32, 1
      %p261 = por %p259, %p260
      %p263 = scmp.ne.s32.totalorder %s246, %s262
      %p264 = scmp.eq.s32.totalorder %s32, 0
      %p265 = por %p263, %p264
      %p266 = scmp.le.s32.totalorder 1, %s26
      %p267 = scmp.lt.s32.totalorder %s26, 3
      %p268 = pnand %p266, %p267
      %p269 = pneg %p268
      // Predicated region
      $region9: #{anomaly_attention.1} parent=5 // pred_check
        _
      $region10: #{anomaly_attention.1} parent=5 // pred_check_branch
        %271 = sbr.rel (%p268) target = $region12
      $region11: #{anomaly_attention.1} parent=5 // pred_region
        %s272 = ssub.s32 %s26, 1
      $region12: #{anomaly_attention.1} parent=5 // pred_fallthru
        _
      %p273 = scmp.lt.s32.totalorder %s26, 2
      // Predicated region
      $region13: #{anomaly_attention.1} parent=5 // pred_check
        %p274 = pneg %p273
      $region14: #{anomaly_attention.1} parent=5 // pred_check_branch
        %276 = sbr.rel (%p274) target = $region16
      $region15: #{anomaly_attention.1} parent=5 // pred_region
        // Predicated region
        $region17: #{anomaly_attention.1} parent=15 // pred_check
          %p277 = pneg %p60
        $region18: #{anomaly_attention.1} parent=15 // pred_check_branch
          %279 = sbr.rel (%p277) target = $region20
        $region19: #{anomaly_attention.1} parent=15 // pred_region
          %s280 = sand.u32 %s50, 1
          %s281 = scalar_lea.sflag [#allocation3], %s280
          %s282 = sand.u32 %s50, 1
          %s283 = smul.addr %s282, 64
          %s284 = scalar_lea.vmem [#allocation2], %s283
          %s285 = smul.u32 16, %s34
          %s287 = ssub.s32 1024, 1024
          %288 = vsyncadd %s281, %s287
          %s289 = smul.addr %s33, 16
          %s290 = sadd.s32 %s285, %s289
          %s291 = smul.addr %s290, 64
          %s292 = scalar_lea.hbm %s0, %s291
          %s293 = sshll.u32 %s284, 4
          %s294 = int_to_ptr.vmem [resolvable:$true] %s293
          %299 = dma.hbm_to_vmem [thread:$0]  %s292, 1024, %s294, %s281, 64, 64, 4
        $region20: #{anomaly_attention.1} parent=15 // pred_fallthru
          _
        // Predicated region
        $region21: #{anomaly_attention.1} parent=15 // pred_check
          %p300 = pneg %p86
        $region22: #{anomaly_attention.1} parent=15 // pred_check_branch
          %302 = sbr.rel (%p300) target = $region24
        $region23: #{anomaly_attention.1} parent=15 // pred_region
          %s303 = sand.u32 %s26, 1
          %s304 = scalar_lea.sflag [#allocation6], %s303
          %s305 = sand.u32 %s76, 1
          %s306 = smul.addr %s305, 64
          %s307 = scalar_lea.vmem [#allocation5], %s306
          %s309 = ssub.s32 1024, 1024
          %310 = vsyncadd %s304, %s309
          %s311 = smul.addr %s33, 16
          %s312 = smul.addr %s311, 64
          %s313 = scalar_lea.hbm %s1, %s312
          %s314 = sshll.u32 %s307, 4
          %s315 = int_to_ptr.vmem [resolvable:$true] %s314
          %320 = dma.hbm_to_vmem [thread:$0]  %s313, 1024, %s315, %s304, 64, 64, 4
        $region24: #{anomaly_attention.1} parent=15 // pred_fallthru
          _
        // Predicated region
        $region25: #{anomaly_attention.1} parent=15 // pred_check
          %p321 = pneg %p112
        $region26: #{anomaly_attention.1} parent=15 // pred_check_branch
          %323 = sbr.rel (%p321) target = $region28
        $region27: #{anomaly_attention.1} parent=15 // pred_region
          %s324 = sand.u32 %s26, 1
          %s325 = scalar_lea.sflag [#allocation6], %s324
          %s326 = sand.u32 %s102, 1
          %s327 = smul.addr %s326, 64
          %s328 = scalar_lea.vmem [#allocation7], %s327
          %s330 = ssub.s32 1024, 1024
          %331 = vsyncadd %s325, %s330
          %s332 = smul.addr %s33, 16
          %s333 = smul.addr %s332, 64
          %s334 = scalar_lea.hbm %s2, %s333
          %s335 = sshll.u32 %s328, 4
          %s336 = int_to_ptr.vmem [resolvable:$true] %s335
          %341 = dma.hbm_to_vmem [thread:$0]  %s334, 1024, %s336, %s325, 64, 64, 4
        $region28: #{anomaly_attention.1} parent=15 // pred_fallthru
          _
        // Predicated region
        $region29: #{anomaly_attention.1} parent=15 // pred_check
          %p342 = pneg %p140
        $region30: #{anomaly_attention.1} parent=15 // pred_check_branch
          %344 = sbr.rel (%p342) target = $region32
        $region31: #{anomaly_attention.1} parent=15 // pred_region
          %s345 = smul.u32 2, %s34
          %p346 = scmp.lt.s32.totalorder %s33, 1
          %s347 = scalar_select %p346, %s33, 1
          %p348 = scmp.lt.s32.totalorder %s345, 1
          %s349 = scalar_select %p348, %s345, 1
          %s350 = smul.addr %s347, 2
          %s351 = sadd.s32 %s349, %s350
          %s352 = smul.addr %s351, 8
          %s353 = scalar_lea.vmem %s3, %s352
          %s354 = smul.u32 2, %s34
        $region32: #{anomaly_attention.1} parent=15 // pred_fallthru
          _
      $region16: #{anomaly_attention.1} parent=5 // pred_fallthru
        _
      %p355 = scmp.le.s32.totalorder 1, %s26
      %p356 = scmp.lt.s32.totalorder %s26, 3
      %p357 = pnand %p355, %p356
      %p358 = pneg %p357
      // Predicated region
      $region33: #{anomaly_attention.1} parent=5 // pred_check
        _
      $region34: #{anomaly_attention.1} parent=5 // pred_check_branch
        %360 = sbr.rel (%p357) target = $region36
      $region35: #{anomaly_attention.1} parent=5 // pred_region
        %s361 = ssub.s32 %s26, 1
        %s362 = sand.u32 %s53, 1
        %s363 = scalar_lea.sflag [#allocation3], %s362
        %s364 = sand.u32 %s53, 1
        %s365 = smul.addr %s364, 64
        %s366 = scalar_lea.vmem [#allocation2], %s365
        // Predicated region
        $region37: #{anomaly_attention.1} parent=35 // pred_check
          %p367 = pneg %p66
        $region38: #{anomaly_attention.1} parent=35 // pred_check_branch
          %369 = sbr.rel (%p367) target = $region40
        $region39: #{anomaly_attention.1} parent=35 // pred_region
          %370 = dma.done %s363, 1024
        $region40: #{anomaly_attention.1} parent=35 // pred_fallthru
          _
        %s371 = sand.u32 %s31, 1
        %s372 = scalar_lea.sflag [#allocation6], %s371
        %s373 = sand.u32 %s79, 1
        %s374 = smul.addr %s373, 64
        %s375 = scalar_lea.vmem [#allocation5], %s374
        // Predicated region
        $region41: #{anomaly_attention.1} parent=35 // pred_check
          %p376 = pneg %p92
        $region42: #{anomaly_attention.1} parent=35 // pred_check_branch
          %378 = sbr.rel (%p376) target = $region44
        $region43: #{anomaly_attention.1} parent=35 // pred_region
          %379 = dma.done %s372, 1024
        $region44: #{anomaly_attention.1} parent=35 // pred_fallthru
          _
        %s380 = sand.u32 %s31, 1
        %s381 = scalar_lea.sflag [#allocation6], %s380
        %s382 = sand.u32 %s105, 1
        %s383 = smul.addr %s382, 64
        %s384 = scalar_lea.vmem [#allocation7], %s383
        // Predicated region
        $region45: #{anomaly_attention.1} parent=35 // pred_check
          %p385 = pneg %p118
        $region46: #{anomaly_attention.1} parent=35 // pred_check_branch
          %387 = sbr.rel (%p385) target = $region48
        $region47: #{anomaly_attention.1} parent=35 // pred_region
          %388 = dma.done %s381, 1024
        $region48: #{anomaly_attention.1} parent=35 // pred_fallthru
          _
        %s389 = sand.u32 %s53, 1
        %s390 = scalar_lea.sflag [#allocation3], %s389
        %s391 = sand.u32 %s53, 1
        %s392 = smul.addr %s391, 64
        %s393 = scalar_lea.vmem [#allocation2], %s392
        %p394 = pneg %p66
        %p395 = pneg %p63
        %s396 = sand.u32 %s31, 1
        %s397 = scalar_lea.sflag [#allocation6], %s396
        %s398 = sand.u32 %s79, 1
        %s399 = smul.addr %s398, 64
        %s400 = scalar_lea.vmem [#allocation5], %s399
        %p401 = pneg %p92
        %p402 = pneg %p89
        %s403 = sand.u32 %s31, 1
        %s404 = scalar_lea.sflag [#allocation6], %s403
        %s405 = sand.u32 %s105, 1
        %s406 = smul.addr %s405, 64
        %s407 = scalar_lea.vmem [#allocation7], %s406
        %p408 = pneg %p118
        %p409 = pneg %p115
        %s410 = smul.u32 2, %s36
        %p411 = scmp.lt.s32.totalorder %s35, 1
        %s412 = scalar_select %p411, %s35, 1
        %p413 = scmp.lt.s32.totalorder %s410, 1
        %s414 = scalar_select %p413, %s410, 1
        %s415 = smul.addr %s412, 2
        %s416 = sadd.s32 %s414, %s415
        %s417 = smul.addr %s416, 8
        %s418 = scalar_lea.vmem %s3, %s417
        %p419 = pneg %p146
        %p420 = pneg %p143
        %p421 = pneg %p174
        %p422 = pneg %p171
        %s423 = sand.u32 %s161, 1
        %s424 = scalar_lea.sflag [#allocation4], %s423
        %s425 = sand.u32 %s161, 1
        %s426 = smul.addr %s425, 64
        %s427 = scalar_lea.vmem [#allocation8], %s426
        %p428 = pneg %p202
        %p429 = pneg %p199
        %s430 = sand.u32 %s31, 1
        %s431 = scalar_lea.sflag [#allocation10], %s430
        %s432 = sand.u32 %s189, 1
        %s433 = smul.addr %s432, 64
        %s434 = scalar_lea.vmem [#allocation9], %s433
        %p435 = pneg %p230
        %p436 = pneg %p227
        %s437 = sand.u32 %s31, 1
        %s438 = scalar_lea.sflag [#allocation10], %s437
        %s439 = sand.u32 %s217, 1
        %s440 = smul.addr %s439, 64
        %s441 = scalar_lea.vmem [#allocation11], %s440
        %p442 = pneg %p258
        %p443 = pneg %p255
        %s444 = smul.u32 2, %s36
        %p445 = scmp.lt.s32.totalorder %s35, 1
        %s446 = scalar_select %p445, %s35, 1
        %p447 = scmp.lt.s32.totalorder %s444, 1
        %s448 = scalar_select %p447, %s444, 1
        %s449 = smul.addr %s446, 2
        %s450 = sadd.s32 %s448, %s449
        %s451 = smul.addr %s450, 8
        %s452 = scalar_lea.vmem %s7, %s451
        %s453 = smul.u32 16, %s36
        %s454 = smul.u32 2, %s36
        %p455 = scmp.lt.s32.totalorder %s35, 1
        %s456 = scalar_select %p455, %s35, 1
        %p457 = scmp.lt.s32.totalorder %s454, 1
        %s458 = scalar_select %p457, %s454, 1
        %s459 = smul.addr %s456, 2
        %s460 = sadd.s32 %s458, %s459
        %s461 = smul.addr %s460, 8
        %s462 = scalar_lea.vmem %s3, %s461
        %s463 = smul.u32 2, %s36
        %s464 = smul.u32 16, %s36
        %s465 = smul.u32 2, %s36
        %s466 = smul.u32 2, %s36
        %s467 = smul.u32 2, %s36
        %p468 = scmp.lt.s32.totalorder %s35, 1
        %s469 = scalar_select %p468, %s35, 1
        %p470 = scmp.lt.s32.totalorder %s467, 1
        %s471 = scalar_select %p470, %s467, 1
        %s472 = smul.addr %s469, 2
        %s473 = sadd.s32 %s471, %s472
        %s474 = smul.addr %s473, 8
        %s475 = scalar_lea.vmem %s7, %s474
        %s476 = smul.u32 2, %s36
        %v477 = vlaneseq
        %v478 = vshrl.u32 %v477, 7
        %v479 = vadd.s32 %v478, 8
        %s480 = smul.u32 %s36, 16
        %v481 = vstv %s480
        %v482 = vadd.s32 %v478, %v481
        %v483 = vadd.s32 %v479, %v481
        %v484 = vlaneseq
        %v485 = vand.u32 %v484, 127
        %vm486 = vcmp.gt.s32.totalorder %v485, %v482
        %vm487 = vcmp.gt.s32.totalorder %v485, %v483
        %v488 = vsel %vm486, -inf, 0.0
        %v489 = vsel %vm487, -inf, 0.0
        %v490 = vsub.s32 %v482, %v485
        %v491 = vsub.s32 %v483, %v485
        %v492 = vcvt.s32.f32 %v490
        %v493 = vcvt.s32.f32 %v491
        %v494 = vmul.f32 %v492, %v492
        %v495 = vmul.f32 %v493, %v493
        %v496 = vld [vmem:[%s462] sm:$0xff]
        %v497 = vld [vmem:[%s462 + $0x8] sm:$0xff]
        %v498 = vmul.f32 %v496, 5.0
        %v499 = vmul.f32 %v497, 5.0
        %v500 = vxor.u32 %v498, 2147483648
        %v501 = vxor.u32 %v499, 2147483648
        %v502 = vmul.f32 %v500, 1.442695
        %v503 = vpow.pop %v502
        %v504 = vmul.f32 %v501, 1.442695
        %v505 = vpow.pop %v504
        %v506 = vadd.f32 %v503, 1.0
        %v507 = vadd.f32 %v505, 1.0
        %v508 = vrcp.pop %v506
        %v509 = vmul.f32 1.0, %v508
        %v510 = vrcp.pop %v507
        %v511 = vmul.f32 1.0, %v510
        %v512 = vadd.f32 %v509, 1e-05
        %v513 = vadd.f32 %v511, 1e-05
        %v514 = vpow.f32 3.0, %v512
        %v515 = vpow.f32 3.0, %v513
        %v516 = vsub.f32 %v514, 1.0
        %v517 = vsub.f32 %v515, 1.0
        %vm518 = vcmask 31744
        %519 = vst.msk [vmem:[%s475] sm:$0xff] %vm518, %v516
        %520 = vst.msk [vmem:[%s475 + $0x8] sm:$0xff] %vm518, %v517
        %v521 = vld [vmem:[%s366] sm:$0x1]
        %v522 = vld [vmem:[%s366 + $0x4] sm:$0x1]
        %v523 = vld [vmem:[%s366 + $0x8] sm:$0x1]
        %v524 = vld [vmem:[%s366 + $0xc] sm:$0x1]
        %v525 = vld [vmem:[%s366 + $0x10] sm:$0x1]
        %v526 = vld [vmem:[%s366 + $0x14] sm:$0x1]
        %v527 = vld [vmem:[%s366 + $0x18] sm:$0x1]
        %v528 = vld [vmem:[%s366 + $0x1c] sm:$0x1]
        %v529 = vld [vmem:[%s366 + $0x20] sm:$0x1]
        %v530 = vld [vmem:[%s366 + $0x24] sm:$0x1]
        %v531 = vld [vmem:[%s366 + $0x28] sm:$0x1]
        %v532 = vld [vmem:[%s366 + $0x2c] sm:$0x1]
        %v533 = vld [vmem:[%s366 + $0x30] sm:$0x1]
        %v534 = vld [vmem:[%s366 + $0x34] sm:$0x1]
        %v535 = vld [vmem:[%s366 + $0x38] sm:$0x1]
        %v536 = vld [vmem:[%s366 + $0x3c] sm:$0x1]
        %v537 = vmul.f32 %v521, 0.17677669
        %v538 = vmul.f32 %v522, 0.17677669
        %v539 = vmul.f32 %v523, 0.17677669
        %v540 = vmul.f32 %v524, 0.17677669
        %v541 = vmul.f32 %v525, 0.17677669
        %v542 = vmul.f32 %v526, 0.17677669
        %v543 = vmul.f32 %v527, 0.17677669
        %v544 = vmul.f32 %v528, 0.17677669
        %v545 = vmul.f32 %v529, 0.17677669
        %v546 = vmul.f32 %v530, 0.17677669
        %v547 = vmul.f32 %v531, 0.17677669
        %v548 = vmul.f32 %v532, 0.17677669
        %v549 = vmul.f32 %v533, 0.17677669
        %v550 = vmul.f32 %v534, 0.17677669
        %v551 = vmul.f32 %v535, 0.17677669
        %v552 = vmul.f32 %v536, 0.17677669
        %v553 = vld [vmem:[%s375] sm:$0x1]
        %v554 = vld [vmem:[%s375 + $0x4] sm:$0x1]
        %v555 = vld [vmem:[%s375 + $0x8] sm:$0x1]
        %v556 = vld [vmem:[%s375 + $0xc] sm:$0x1]
        %v557 = vld [vmem:[%s375 + $0x10] sm:$0x1]
        %v558 = vld [vmem:[%s375 + $0x14] sm:$0x1]
        %v559 = vld [vmem:[%s375 + $0x18] sm:$0x1]
        %v560 = vld [vmem:[%s375 + $0x1c] sm:$0x1]
        %v561 = vld [vmem:[%s375 + $0x20] sm:$0x1]
        %v562 = vld [vmem:[%s375 + $0x24] sm:$0x1]
        %v563 = vld [vmem:[%s375 + $0x28] sm:$0x1]
        %v564 = vld [vmem:[%s375 + $0x2c] sm:$0x1]
        %v565 = vld [vmem:[%s375 + $0x30] sm:$0x1]
        %v566 = vld [vmem:[%s375 + $0x34] sm:$0x1]
        %v567 = vld [vmem:[%s375 + $0x38] sm:$0x1]
        %v568 = vld [vmem:[%s375 + $0x3c] sm:$0x1]
        %v585 = vrot.slane %v538, 7
        %vm586 = vcmask 1041409
        %v587 = vsel %vm586, %v585, %v537
        %v588 = vrot.slane %v539, 6
        %vm589 = vcmask 1042434
        %v590 = vsel %vm589, %v588, %v587
        %v591 = vrot.slane %v540, 5
        %vm592 = vcmask 1043459
        %v593 = vsel %vm592, %v591, %v590
        %v594 = vrot.slane %v541, 4
        %vm595 = vcmask 1044484
        %v596 = vsel %vm595, %v594, %v593
        %v597 = vrot.slane %v542, 3
        %vm598 = vcmask 1045509
        %v599 = vsel %vm598, %v597, %v596
        %v600 = vrot.slane %v543, 2
        %vm601 = vcmask 1046534
        %v602 = vsel %vm601, %v600, %v599
        %v603 = vrot.slane %v544, 1
        %vm604 = vcmask 1047559
        %v605 = vsel %vm604, %v603, %v602
        %v606 = vrot.slane %v546, 7
        %v607 = vsel %vm586, %v606, %v545
        %v608 = vrot.slane %v547, 6
        %v609 = vsel %vm589, %v608, %v607
        %v610 = vrot.slane %v548, 5
        %v611 = vsel %vm592, %v610, %v609
        %v612 = vrot.slane %v549, 4
        %v613 = vsel %vm595, %v612, %v611
        %v614 = vrot.slane %v550, 3
        %v615 = vsel %vm598, %v614, %v613
        %v616 = vrot.slane %v551, 2
        %v617 = vsel %vm601, %v616, %v615
        %v618 = vrot.slane %v552, 1
        %v619 = vsel %vm604, %v618, %v617
        %v636 = vrot.slane %v554, 7
        %v637 = vsel %vm586, %v636, %v553
        %v638 = vrot.slane %v555, 6
        %v639 = vsel %vm589, %v638, %v637
        %v640 = vrot.slane %v556, 5
        %v641 = vsel %vm592, %v640, %v639
        %v642 = vrot.slane %v557, 4
        %v643 = vsel %vm595, %v642, %v641
        %v644 = vrot.slane %v558, 3
        %v645 = vsel %vm598, %v644, %v643
        %v646 = vrot.slane %v559, 2
        %v647 = vsel %vm601, %v646, %v645
        %v648 = vrot.slane %v560, 1
        %v649 = vsel %vm604, %v648, %v647
        %v650 = vrot.slane %v562, 7
        %v651 = vsel %vm586, %v650, %v561
        %v652 = vrot.slane %v563, 6
        %v653 = vsel %vm589, %v652, %v651
        %v654 = vrot.slane %v564, 5
        %v655 = vsel %vm592, %v654, %v653
        %v656 = vrot.slane %v565, 4
        %v657 = vsel %vm595, %v656, %v655
        %v658 = vrot.slane %v566, 3
        %v659 = vsel %vm598, %v658, %v657
        %v660 = vrot.slane %v567, 2
        %v661 = vsel %vm601, %v660, %v659
        %v662 = vrot.slane %v568, 1
        %v663 = vsel %vm604, %v662, %v661
        %vm664 = vcmask 261120
        %v665 = vsel %vm664, %v605, 0
        %v667 = vsel %vm664, %v619, 0
        %v669 = vsel %vm664, %v649, 0
        %v671 = vsel %vm664, %v663, 0
        %673 = vmatprep.subr.mxu0 0.0
        %674 = vmatpush1.xpose.msra.mxu0 0.0
        %675 = vmatprep.subr.mxu0 0.0
        %676 = vmatpush1.xpose.msra.mxu0 0.0
        %677 = vmatprep.subr.mxu0 0.0
        %678 = vmatpush1.xpose.msra.mxu0 0.0
        %679 = vmatprep.subr.mxu0 0.0
        %680 = vmatpush1.xpose.msra.mxu0 0.0
        %681 = vmatprep.subr.mxu0 0.0
        %682 = vmatpush1.xpose.msra.mxu0 0.0
        %683 = vmatprep.subr.mxu0 0.0
        %684 = vmatpush1.xpose.msra.mxu0 0.0
        %685 = vmatprep.subr.mxu0 0.0
        %686 = vmatpush1.xpose.msra.mxu0 0.0
        %687 = vmatprep.subr.mxu0 0.0
        %688 = vmatpush1.xpose.msra.mxu0 0.0
        %689 = vmatprep.subr.mxu0 0.0
        %690 = vmatpush1.xpose.msra.mxu0 0.0
        %691 = vmatprep.subr.mxu0 0.0
        %692 = vmatpush1.xpose.msra.mxu0 0.0
        %693 = vmatprep.subr.mxu0 0.0
        %694 = vmatpush1.xpose.msra.mxu0 0.0
        %695 = vmatprep.subr.mxu0 0.0
        %696 = vmatpush1.xpose.msra.mxu0 0.0
        %697 = vmatprep.subr.mxu0 0.0
        %698 = vmatpush1.xpose.msra.mxu0 0.0
        %699 = vmatprep.subr.mxu0 0.0
        %700 = vmatpush1.xpose.msra.mxu0 0.0
        %701 = vmatprep.subr.mxu0 0.0
        %702 = vmatpush1.xpose.msra.mxu0 %v671
        %703 = vmatprep.subr.mxu0 0.0
        %704 = vmatpush1.xpose.msra.mxu0 %v669
        %705 = vmatprep.subr.mxu0 0.0
        %706 = vmatpush2.xpose.msra.mxu0 0.0
        %707 = vmatprep.subr.mxu0 0.0
        %708 = vmatpush2.xpose.msra.mxu0 0.0
        %709 = vmatprep.subr.mxu0 0.0
        %710 = vmatpush2.xpose.msra.mxu0 0.0
        %711 = vmatprep.subr.mxu0 0.0
        %712 = vmatpush2.xpose.msra.mxu0 0.0
        %713 = vmatprep.subr.mxu0 0.0
        %714 = vmatpush2.xpose.msra.mxu0 0.0
        %715 = vmatprep.subr.mxu0 0.0
        %716 = vmatpush2.xpose.msra.mxu0 0.0
        %717 = vmatprep.subr.mxu0 0.0
        %718 = vmatpush2.xpose.msra.mxu0 0.0
        %719 = vmatprep.subr.mxu0 0.0
        %720 = vmatpush2.xpose.msra.mxu0 0.0
        %721 = vmatprep.subr.mxu0 0.0
        %722 = vmatpush2.xpose.msra.mxu0 0.0
        %723 = vmatprep.subr.mxu0 0.0
        %724 = vmatpush2.xpose.msra.mxu0 0.0
        %725 = vmatprep.subr.mxu0 0.0
        %726 = vmatpush2.xpose.msra.mxu0 0.0
        %727 = vmatprep.subr.mxu0 0.0
        %728 = vmatpush2.xpose.msra.mxu0 0.0
        %729 = vmatprep.subr.mxu0 0.0
        %730 = vmatpush2.xpose.msra.mxu0 0.0
        %731 = vmatprep.subr.mxu0 0.0
        %732 = vmatpush2.xpose.msra.mxu0 0.0
        %733 = vmatprep.subr.mxu0 0.0
        %734 = vmatpush2.xpose.msra.mxu0 0.0
        %735 = vmatprep.subr.mxu0 0.0
        %736 = vmatpush2.xpose.msra.mxu0 0.0
        %737 = vmatprep.mubr.f32.mxu0 0.0
        %738 = vmatmul.mubr.f32.gmra.mxu0 %v665
        %v739 = vpop.f32.mrf.mxu0
        %v740 = vadd.f32 %v488, %v739
        %v741 = vpop.f32.mrf.mxu0
        %742 = vmatprep.mubr.f32.mxu0 0.0
        %743 = vmatmul.mubr.f32.gmra.mxu0 %v667
        %v744 = vpop.f32.mrf.mxu0
        %v745 = vadd.f32 %v489, %v744
        %v746 = vpop.f32.mrf.mxu0
        %747 = vdwg.mxu0
        %vm748 = vcmask 130048
        %v749 = vsel %vm748, %v740, -inf
        %750 = vmax.xlane.f32.xlu0 %v749
        %v751 = vpop.xlane.xlu0 %750
        %v752 = vsel %vm748, %v745, -inf
        %753 = vmax.xlane.f32.xlu0 %v752
        %v754 = vpop.xlane.xlu0 %753
        %v755 = vsub.f32 %v740, %v751
        %v756 = vsub.f32 %v745, %v754
        %v757 = vmul.f32 %v755, 1.442695
        %v758 = vpow.pop %v757
        %v759 = vmul.f32 %v756, 1.442695
        %v760 = vpow.pop %v759
        %v761 = vsel %vm748, %v758, 0.0
        %762 = vadd.xlane.f32.xlu0 %v761
        %v763 = vpop.xlane.xlu0 %762
        %v764 = vsel %vm748, %v760, 0.0
        %765 = vadd.xlane.f32.xlu0 %v764
        %v766 = vpop.xlane.xlu0 %765
        %v767 = vrcp.pop %v763
        %v768 = vrcp.pop %v766
        %v769 = vmul.f32 %v758, %v767
        %v770 = vmul.f32 %v760, %v768
        %v771 = vrcp.pop %v516
        %v772 = vrcp.pop %v517
        %v773 = vmul.f32 %v771, -0.5
        %v774 = vmul.f32 %v772, -0.5
        %v775 = vmul.f32 %v773, %v771
        %v776 = vmul.f32 %v774, %v772
        %v777 = vmul.f32 %v771, 0.3989423
        %v778 = vmul.f32 %v772, 0.3989423
        %780 = vset.pattern.permute.xlu0 0
        %781 = vperm.xlu0 %780, %v775
        %v782 = vpop.permute.xlu0 %781
        %785 = vset.pattern.permute.xlu0 0
        %786 = vperm.xlu0 %785, %v776
        %v787 = vpop.permute.xlu0 %786
        %v789 = vmul.f32 %v494, %v782
        %v790 = vmul.f32 %v495, %v787
        %v791 = vmul.f32 %v789, 1.442695
        %v792 = vpow.pop %v791
        %v793 = vmul.f32 %v790, 1.442695
        %v794 = vpow.pop %v793
        %796 = vset.pattern.permute.xlu0 0
        %797 = vperm.xlu0 %796, %v777
        %v798 = vpop.permute.xlu0 %797
        %801 = vset.pattern.permute.xlu0 0
        %802 = vperm.xlu0 %801, %v778
        %v803 = vpop.permute.xlu0 %802
        %v805 = vmul.f32 %v798, %v792
        %v806 = vmul.f32 %v803, %v794
        %v807 = vld [vmem:[%s384] sm:$0x1]
        %v808 = vld [vmem:[%s384 + $0x4] sm:$0x1]
        %v809 = vld [vmem:[%s384 + $0x8] sm:$0x1]
        %v810 = vld [vmem:[%s384 + $0xc] sm:$0x1]
        %v811 = vld [vmem:[%s384 + $0x10] sm:$0x1]
        %v812 = vld [vmem:[%s384 + $0x14] sm:$0x1]
        %v813 = vld [vmem:[%s384 + $0x18] sm:$0x1]
        %v814 = vld [vmem:[%s384 + $0x1c] sm:$0x1]
        %v815 = vld [vmem:[%s384 + $0x20] sm:$0x1]
        %v816 = vld [vmem:[%s384 + $0x24] sm:$0x1]
        %v817 = vld [vmem:[%s384 + $0x28] sm:$0x1]
        %v818 = vld [vmem:[%s384 + $0x2c] sm:$0x1]
        %v819 = vld [vmem:[%s384 + $0x30] sm:$0x1]
        %v820 = vld [vmem:[%s384 + $0x34] sm:$0x1]
        %v821 = vld [vmem:[%s384 + $0x38] sm:$0x1]
        %v822 = vld [vmem:[%s384 + $0x3c] sm:$0x1]
        %v839 = vrot.slane %v808, 7
        %v840 = vsel %vm586, %v839, %v807
        %v841 = vrot.slane %v809, 6
        %v842 = vsel %vm589, %v841, %v840
        %v843 = vrot.slane %v810, 5
        %v844 = vsel %vm592, %v843, %v842
        %v845 = vrot.slane %v811, 4
        %v846 = vsel %vm595, %v845, %v844
        %v847 = vrot.slane %v812, 3
        %v848 = vsel %vm598, %v847, %v846
        %v849 = vrot.slane %v813, 2
        %v850 = vsel %vm601, %v849, %v848
        %v851 = vrot.slane %v814, 1
        %v852 = vsel %vm604, %v851, %v850
        %v853 = vrot.slane %v816, 7
        %v854 = vsel %vm586, %v853, %v815
        %v855 = vrot.slane %v817, 6
        %v856 = vsel %vm589, %v855, %v854
        %v857 = vrot.slane %v818, 5
        %v858 = vsel %vm592, %v857, %v856
        %v859 = vrot.slane %v819, 4
        %v860 = vsel %vm595, %v859, %v858
        %v861 = vrot.slane %v820, 3
        %v862 = vsel %vm598, %v861, %v860
        %v863 = vrot.slane %v821, 2
        %v864 = vsel %vm601, %v863, %v862
        %v865 = vrot.slane %v822, 1
        %v866 = vsel %vm604, %v865, %v864
        %v870 = vsel %vm748, %v769, 0
        %v873 = vsel %vm748, %v770, 0
        %875 = vmatprep.subr.mxu0 0.0
        %876 = vmatpush1.msra.mxu0 0.0
        %877 = vmatprep.subr.mxu0 0.0
        %878 = vmatpush1.msra.mxu0 0.0
        %879 = vmatprep.subr.mxu0 0.0
        %880 = vmatpush1.msra.mxu0 0.0
        %881 = vmatprep.subr.mxu0 0.0
        %882 = vmatpush1.msra.mxu0 0.0
        %883 = vmatprep.subr.mxu0 0.0
        %884 = vmatpush1.msra.mxu0 0.0
        %885 = vmatprep.subr.mxu0 0.0
        %886 = vmatpush1.msra.mxu0 0.0
        %887 = vmatprep.subr.mxu0 0.0
        %888 = vmatpush1.msra.mxu0 0.0
        %889 = vmatprep.subr.mxu0 0.0
        %890 = vmatpush1.msra.mxu0 0.0
        %891 = vmatprep.subr.mxu0 0.0
        %892 = vmatpush1.msra.mxu0 0.0
        %893 = vmatprep.subr.mxu0 0.0
        %894 = vmatpush1.msra.mxu0 0.0
        %895 = vmatprep.subr.mxu0 0.0
        %896 = vmatpush1.msra.mxu0 0.0
        %897 = vmatprep.subr.mxu0 0.0
        %898 = vmatpush1.msra.mxu0 0.0
        %899 = vmatprep.subr.mxu0 0.0
        %900 = vmatpush1.msra.mxu0 0.0
        %901 = vmatprep.subr.mxu0 0.0
        %902 = vmatpush1.msra.mxu0 0.0
        %903 = vmatprep.subr.mxu0 0.0
        %904 = vmatpush1.msra.mxu0 %v866
        %905 = vmatprep.subr.mxu0 0.0
        %906 = vmatpush1.msra.mxu0 %v852
        %907 = vmatprep.subr.mxu0 0.0
        %908 = vmatpush2.msra.mxu0 0.0
        %909 = vmatprep.subr.mxu0 0.0
        %910 = vmatpush2.msra.mxu0 0.0
        %911 = vmatprep.subr.mxu0 0.0
        %912 = vmatpush2.msra.mxu0 0.0
        %913 = vmatprep.subr.mxu0 0.0
        %914 = vmatpush2.msra.mxu0 0.0
        %915 = vmatprep.subr.mxu0 0.0
        %916 = vmatpush2.msra.mxu0 0.0
        %917 = vmatprep.subr.mxu0 0.0
        %918 = vmatpush2.msra.mxu0 0.0
        %919 = vmatprep.subr.mxu0 0.0
        %920 = vmatpush2.msra.mxu0 0.0
        %921 = vmatprep.subr.mxu0 0.0
        %922 = vmatpush2.msra.mxu0 0.0
        %923 = vmatprep.subr.mxu0 0.0
        %924 = vmatpush2.msra.mxu0 0.0
        %925 = vmatprep.subr.mxu0 0.0
        %926 = vmatpush2.msra.mxu0 0.0
        %927 = vmatprep.subr.mxu0 0.0
        %928 = vmatpush2.msra.mxu0 0.0
        %929 = vmatprep.subr.mxu0 0.0
        %930 = vmatpush2.msra.mxu0 0.0
        %931 = vmatprep.subr.mxu0 0.0
        %932 = vmatpush2.msra.mxu0 0.0
        %933 = vmatprep.subr.mxu0 0.0
        %934 = vmatpush2.msra.mxu0 0.0
        %935 = vmatprep.subr.mxu0 0.0
        %936 = vmatpush2.msra.mxu0 0.0
        %937 = vmatprep.subr.mxu0 0.0
        %938 = vmatpush2.msra.mxu0 0.0
        %939 = vmatprep.mubr.f32.mxu0 0.0
        %940 = vmatmul.mubr.f32.gmra.mxu0 %v870
        %v941 = vpop.f32.mrf.mxu0
        %v942 = vadd.f32 0.0, %v941
        %v943 = vpop.f32.mrf.mxu0
        %944 = vmatprep.mubr.f32.mxu0 0.0
        %945 = vmatmul.mubr.f32.gmra.mxu0 %v873
        %v946 = vpop.f32.mrf.mxu0
        %v947 = vadd.f32 0.0, %v946
        %v948 = vpop.f32.mrf.mxu0
        %949 = vdwg.mxu0
        %950 = vst.msk [vmem:[%s434] sm:$0xff] %vm748, %v769
        %951 = vst.msk [vmem:[%s434 + $0x8] sm:$0xff] %vm748, %v770
        %952 = vst.msk [vmem:[%s441] sm:$0xff] %vm748, %v805
        %953 = vst.msk [vmem:[%s441 + $0x8] sm:$0xff] %vm748, %v806
        %v956 = vcombine.high %v942, %v942
        %v958 = vunpack.c.l.s4 1966171168
        %v959 = vunpack.c.0.s8 %v958
        %v960 = vlaneseq
        %v961 = vshrl.u32 %v960, 7
        %v962 = vsub.s32 %v959, %v961
        %v963 = vrot.slane %v942, %v962
        %v965 = vunpack.c.l.s4 1966171168
        %v966 = vunpack.c.0.s8 %v965
        %v967 = vlaneseq
        %v968 = vshrl.u32 %v967, 7
        %v969 = vsub.s32 %v966, %v968
        %v970 = vrot.slane %v956, %v969
        %v971 = vcombine.high %v963, %v963
        %v972 = vcombine.high %v970, %v970
        %v974 = vunpack.c.l.s4 1966171168
        %v975 = vunpack.c.0.s8 %v974
        %v976 = vlaneseq
        %v977 = vshrl.u32 %v976, 7
        %v978 = vsub.s32 %v975, %v977
        %v979 = vrot.slane %v963, %v978
        %v981 = vunpack.c.l.s4 1966171168
        %v982 = vunpack.c.0.s8 %v981
        %v983 = vlaneseq
        %v984 = vshrl.u32 %v983, 7
        %v985 = vsub.s32 %v982, %v984
        %v986 = vrot.slane %v970, %v985
        %v988 = vunpack.c.l.s4 1966171168
        %v989 = vunpack.c.0.s8 %v988
        %v990 = vlaneseq
        %v991 = vshrl.u32 %v990, 7
        %v992 = vsub.s32 %v989, %v991
        %v993 = vrot.slane %v971, %v992
        %v995 = vunpack.c.l.s4 1966171168
        %v996 = vunpack.c.0.s8 %v995
        %v997 = vlaneseq
        %v998 = vshrl.u32 %v997, 7
        %v999 = vsub.s32 %v996, %v998
        %v1000 = vrot.slane %v972, %v999
        %v1001 = vcombine.high %v979, %v979
        %v1002 = vcombine.high %v986, %v986
        %v1003 = vcombine.high %v993, %v993
        %v1004 = vcombine.high %v1000, %v1000
        %v1005 = vcombine.high %v947, %v947
        %v1007 = vunpack.c.l.s4 1966171168
        %v1008 = vunpack.c.0.s8 %v1007
        %v1009 = vlaneseq
        %v1010 = vshrl.u32 %v1009, 7
        %v1011 = vsub.s32 %v1008, %v1010
        %v1012 = vrot.slane %v947, %v1011
        %v1014 = vunpack.c.l.s4 1966171168
        %v1015 = vunpack.c.0.s8 %v1014
        %v1016 = vlaneseq
        %v1017 = vshrl.u32 %v1016, 7
        %v1018 = vsub.s32 %v1015, %v1017
        %v1019 = vrot.slane %v1005, %v1018
        %v1020 = vcombine.high %v1012, %v1012
        %v1021 = vcombine.high %v1019, %v1019
        %v1023 = vunpack.c.l.s4 1966171168
        %v1024 = vunpack.c.0.s8 %v1023
        %v1025 = vlaneseq
        %v1026 = vshrl.u32 %v1025, 7
        %v1027 = vsub.s32 %v1024, %v1026
        %v1028 = vrot.slane %v1012, %v1027
        %v1030 = vunpack.c.l.s4 1966171168
        %v1031 = vunpack.c.0.s8 %v1030
        %v1032 = vlaneseq
        %v1033 = vshrl.u32 %v1032, 7
        %v1034 = vsub.s32 %v1031, %v1033
        %v1035 = vrot.slane %v1019, %v1034
        %v1037 = vunpack.c.l.s4 1966171168
        %v1038 = vunpack.c.0.s8 %v1037
        %v1039 = vlaneseq
        %v1040 = vshrl.u32 %v1039, 7
        %v1041 = vsub.s32 %v1038, %v1040
        %v1042 = vrot.slane %v1020, %v1041
        %v1044 = vunpack.c.l.s4 1966171168
        %v1045 = vunpack.c.0.s8 %v1044
        %v1046 = vlaneseq
        %v1047 = vshrl.u32 %v1046, 7
        %v1048 = vsub.s32 %v1045, %v1047
        %v1049 = vrot.slane %v1021, %v1048
        %v1050 = vcombine.high %v1028, %v1028
        %v1051 = vcombine.high %v1035, %v1035
        %v1052 = vcombine.high %v1042, %v1042
        %v1053 = vcombine.high %v1049, %v1049
        %vm1070 = vcmask 253952
        %1071 = vst.msk [vmem:[%s427] sm:$0x1] %vm1070, %v979
        %1072 = vst.msk [vmem:[%s427 + $0x4] sm:$0x1] %vm1070, %v993
        %1073 = vst.msk [vmem:[%s427 + $0x8] sm:$0x1] %vm1070, %v1001
        %1074 = vst.msk [vmem:[%s427 + $0xc] sm:$0x1] %vm1070, %v1003
        %1075 = vst.msk [vmem:[%s427 + $0x10] sm:$0x1] %vm1070, %v986
        %1076 = vst.msk [vmem:[%s427 + $0x14] sm:$0x1] %vm1070, %v1000
        %1077 = vst.msk [vmem:[%s427 + $0x18] sm:$0x1] %vm1070, %v1002
        %1078 = vst.msk [vmem:[%s427 + $0x1c] sm:$0x1] %vm1070, %v1004
        %1079 = vst.msk [vmem:[%s427 + $0x20] sm:$0x1] %vm1070, %v1028
        %1080 = vst.msk [vmem:[%s427 + $0x24] sm:$0x1] %vm1070, %v1042
        %1081 = vst.msk [vmem:[%s427 + $0x28] sm:$0x1] %vm1070, %v1050
        %1082 = vst.msk [vmem:[%s427 + $0x2c] sm:$0x1] %vm1070, %v1052
        %1083 = vst.msk [vmem:[%s427 + $0x30] sm:$0x1] %vm1070, %v1035
        %1084 = vst.msk [vmem:[%s427 + $0x34] sm:$0x1] %vm1070, %v1049
        %1085 = vst.msk [vmem:[%s427 + $0x38] sm:$0x1] %vm1070, %v1051
        %1086 = vst.msk [vmem:[%s427 + $0x3c] sm:$0x1] %vm1070, %v1053
        %v1087 = vld [vmem:[%s366 + $0x1] sm:$0x1]
        %v1088 = vld [vmem:[%s366 + $0x5] sm:$0x1]
        %v1089 = vld [vmem:[%s366 + $0x9] sm:$0x1]
        %v1090 = vld [vmem:[%s366 + $0xd] sm:$0x1]
        %v1091 = vld [vmem:[%s366 + $0x11] sm:$0x1]
        %v1092 = vld [vmem:[%s366 + $0x15] sm:$0x1]
        %v1093 = vld [vmem:[%s366 + $0x19] sm:$0x1]
        %v1094 = vld [vmem:[%s366 + $0x1d] sm:$0x1]
        %v1095 = vld [vmem:[%s366 + $0x21] sm:$0x1]
        %v1096 = vld [vmem:[%s366 + $0x25] sm:$0x1]
        %v1097 = vld [vmem:[%s366 + $0x29] sm:$0x1]
        %v1098 = vld [vmem:[%s366 + $0x2d] sm:$0x1]
        %v1099 = vld [vmem:[%s366 + $0x31] sm:$0x1]
        %v1100 = vld [vmem:[%s366 + $0x35] sm:$0x1]
        %v1101 = vld [vmem:[%s366 + $0x39] sm:$0x1]
        %v1102 = vld [vmem:[%s366 + $0x3d] sm:$0x1]
        %v1103 = vmul.f32 %v1087, 0.17677669
        %v1104 = vmul.f32 %v1088, 0.17677669
        %v1105 = vmul.f32 %v1089, 0.17677669
        %v1106 = vmul.f32 %v1090, 0.17677669
        %v1107 = vmul.f32 %v1091, 0.17677669
        %v1108 = vmul.f32 %v1092, 0.17677669
        %v1109 = vmul.f32 %v1093, 0.17677669
        %v1110 = vmul.f32 %v1094, 0.17677669
        %v1111 = vmul.f32 %v1095, 0.17677669
        %v1112 = vmul.f32 %v1096, 0.17677669
        %v1113 = vmul.f32 %v1097, 0.17677669
        %v1114 = vmul.f32 %v1098, 0.17677669
        %v1115 = vmul.f32 %v1099, 0.17677669
        %v1116 = vmul.f32 %v1100, 0.17677669
        %v1117 = vmul.f32 %v1101, 0.17677669
        %v1118 = vmul.f32 %v1102, 0.17677669
        %v1119 = vld [vmem:[%s375 + $0x1] sm:$0x1]
        %v1120 = vld [vmem:[%s375 + $0x5] sm:$0x1]
        %v1121 = vld [vmem:[%s375 + $0x9] sm:$0x1]
        %v1122 = vld [vmem:[%s375 + $0xd] sm:$0x1]
        %v1123 = vld [vmem:[%s375 + $0x11] sm:$0x1]
        %v1124 = vld [vmem:[%s375 + $0x15] sm:$0x1]
        %v1125 = vld [vmem:[%s375 + $0x19] sm:$0x1]
        %v1126 = vld [vmem:[%s375 + $0x1d] sm:$0x1]
        %v1127 = vld [vmem:[%s375 + $0x21] sm:$0x1]
        %v1128 = vld [vmem:[%s375 + $0x25] sm:$0x1]
        %v1129 = vld [vmem:[%s375 + $0x29] sm:$0x1]
        %v1130 = vld [vmem:[%s375 + $0x2d] sm:$0x1]
        %v1131 = vld [vmem:[%s375 + $0x31] sm:$0x1]
        %v1132 = vld [vmem:[%s375 + $0x35] sm:$0x1]
        %v1133 = vld [vmem:[%s375 + $0x39] sm:$0x1]
        %v1134 = vld [vmem:[%s375 + $0x3d] sm:$0x1]
        %v1151 = vrot.slane %v1104, 7
        %v1152 = vsel %vm586, %v1151, %v1103
        %v1153 = vrot.slane %v1105, 6
        %v1154 = vsel %vm589, %v1153, %v1152
        %v1155 = vrot.slane %v1106, 5
        %v1156 = vsel %vm592, %v1155, %v1154
        %v1157 = vrot.slane %v1107, 4
        %v1158 = vsel %vm595, %v1157, %v1156
        %v1159 = vrot.slane %v1108, 3
        %v1160 = vsel %vm598, %v1159, %v1158
        %v1161 = vrot.slane %v1109, 2
        %v1162 = vsel %vm601, %v1161, %v1160
        %v1163 = vrot.slane %v1110, 1
        %v1164 = vsel %vm604, %v1163, %v1162
        %v1165 = vrot.slane %v1112, 7
        %v1166 = vsel %vm586, %v1165, %v1111
        %v1167 = vrot.slane %v1113, 6
        %v1168 = vsel %vm589, %v1167, %v1166
        %v1169 = vrot.slane %v1114, 5
        %v1170 = vsel %vm592, %v1169, %v1168
        %v1171 = vrot.slane %v1115, 4
        %v1172 = vsel %vm595, %v1171, %v1170
        %v1173 = vrot.slane %v1116, 3
        %v1174 = vsel %vm598, %v1173, %v1172
        %v1175 = vrot.slane %v1117, 2
        %v1176 = vsel %vm601, %v1175, %v1174
        %v1177 = vrot.slane %v1118, 1
        %v1178 = vsel %vm604, %v1177, %v1176
        %v1195 = vrot.slane %v1120, 7
        %v1196 = vsel %vm586, %v1195, %v1119
        %v1197 = vrot.slane %v1121, 6
        %v1198 = vsel %vm589, %v1197, %v1196
        %v1199 = vrot.slane %v1122, 5
        %v1200 = vsel %vm592, %v1199, %v1198
        %v1201 = vrot.slane %v1123, 4
        %v1202 = vsel %vm595, %v1201, %v1200
        %v1203 = vrot.slane %v1124, 3
        %v1204 = vsel %vm598, %v1203, %v1202
        %v1205 = vrot.slane %v1125, 2
        %v1206 = vsel %vm601, %v1205, %v1204
        %v1207 = vrot.slane %v1126, 1
        %v1208 = vsel %vm604, %v1207, %v1206
        %v1209 = vrot.slane %v1128, 7
        %v1210 = vsel %vm586, %v1209, %v1127
        %v1211 = vrot.slane %v1129, 6
        %v1212 = vsel %vm589, %v1211, %v1210
        %v1213 = vrot.slane %v1130, 5
        %v1214 = vsel %vm592, %v1213, %v1212
        %v1215 = vrot.slane %v1131, 4
        %v1216 = vsel %vm595, %v1215, %v1214
        %v1217 = vrot.slane %v1132, 3
        %v1218 = vsel %vm598, %v1217, %v1216
        %v1219 = vrot.slane %v1133, 2
        %v1220 = vsel %vm601, %v1219, %v1218
        %v1221 = vrot.slane %v1134, 1
        %v1222 = vsel %vm604, %v1221, %v1220
        %v1223 = vsel %vm664, %v1164, 0
        %v1225 = vsel %vm664, %v1178, 0
        %v1227 = vsel %vm664, %v1208, 0
        %v1229 = vsel %vm664, %v1222, 0
        %1231 = vmatprep.subr.mxu0 0.0
        %1232 = vmatpush1.xpose.msra.mxu0 0.0
        %1233 = vmatprep.subr.mxu0 0.0
        %1234 = vmatpush1.xpose.msra.mxu0 0.0
        %1235 = vmatprep.subr.mxu0 0.0
        %1236 = vmatpush1.xpose.msra.mxu0 0.0
        %1237 = vmatprep.subr.mxu0 0.0
        %1238 = vmatpush1.xpose.msra.mxu0 0.0
        %1239 = vmatprep.subr.mxu0 0.0
        %1240 = vmatpush1.xpose.msra.mxu0 0.0
        %1241 = vmatprep.subr.mxu0 0.0
        %1242 = vmatpush1.xpose.msra.mxu0 0.0
        %1243 = vmatprep.subr.mxu0 0.0
        %1244 = vmatpush1.xpose.msra.mxu0 0.0
        %1245 = vmatprep.subr.mxu0 0.0
        %1246 = vmatpush1.xpose.msra.mxu0 0.0
        %1247 = vmatprep.subr.mxu0 0.0
        %1248 = vmatpush1.xpose.msra.mxu0 0.0
        %1249 = vmatprep.subr.mxu0 0.0
        %1250 = vmatpush1.xpose.msra.mxu0 0.0
        %1251 = vmatprep.subr.mxu0 0.0
        %1252 = vmatpush1.xpose.msra.mxu0 0.0
        %1253 = vmatprep.subr.mxu0 0.0
        %1254 = vmatpush1.xpose.msra.mxu0 0.0
        %1255 = vmatprep.subr.mxu0 0.0
        %1256 = vmatpush1.xpose.msra.mxu0 0.0
        %1257 = vmatprep.subr.mxu0 0.0
        %1258 = vmatpush1.xpose.msra.mxu0 0.0
        %1259 = vmatprep.subr.mxu0 0.0
        %1260 = vmatpush1.xpose.msra.mxu0 %v1229
        %1261 = vmatprep.subr.mxu0 0.0
        %1262 = vmatpush1.xpose.msra.mxu0 %v1227
        %1263 = vmatprep.subr.mxu0 0.0
        %1264 = vmatpush2.xpose.msra.mxu0 0.0
        %1265 = vmatprep.subr.mxu0 0.0
        %1266 = vmatpush2.xpose.msra.mxu0 0.0
        %1267 = vmatprep.subr.mxu0 0.0
        %1268 = vmatpush2.xpose.msra.mxu0 0.0
        %1269 = vmatprep.subr.mxu0 0.0
        %1270 = vmatpush2.xpose.msra.mxu0 0.0
        %1271 = vmatprep.subr.mxu0 0.0
        %1272 = vmatpush2.xpose.msra.mxu0 0.0
        %1273 = vmatprep.subr.mxu0 0.0
        %1274 = vmatpush2.xpose.msra.mxu0 0.0
        %1275 = vmatprep.subr.mxu0 0.0
        %1276 = vmatpush2.xpose.msra.mxu0 0.0
        %1277 = vmatprep.subr.mxu0 0.0
        %1278 = vmatpush2.xpose.msra.mxu0 0.0
        %1279 = vmatprep.subr.mxu0 0.0
        %1280 = vmatpush2.xpose.msra.mxu0 0.0
        %1281 = vmatprep.subr.mxu0 0.0
        %1282 = vmatpush2.xpose.msra.mxu0 0.0
        %1283 = vmatprep.subr.mxu0 0.0
        %1284 = vmatpush2.xpose.msra.mxu0 0.0
        %1285 = vmatprep.subr.mxu0 0.0
        %1286 = vmatpush2.xpose.msra.mxu0 0.0
        %1287 = vmatprep.subr.mxu0 0.0
        %1288 = vmatpush2.xpose.msra.mxu0 0.0
        %1289 = vmatprep.subr.mxu0 0.0
        %1290 = vmatpush2.xpose.msra.mxu0 0.0
        %1291 = vmatprep.subr.mxu0 0.0
        %1292 = vmatpush2.xpose.msra.mxu0 0.0
        %1293 = vmatprep.subr.mxu0 0.0
        %1294 = vmatpush2.xpose.msra.mxu0 0.0
        %1295 = vmatprep.mubr.f32.mxu0 0.0
        %1296 = vmatmul.mubr.f32.gmra.mxu0 %v1223
        %v1297 = vpop.f32.mrf.mxu0
        %v1298 = vadd.f32 %v488, %v1297
        %v1299 = vpop.f32.mrf.mxu0
        %1300 = vmatprep.mubr.f32.mxu0 0.0
        %1301 = vmatmul.mubr.f32.gmra.mxu0 %v1225
        %v1302 = vpop.f32.mrf.mxu0
        %v1303 = vadd.f32 %v489, %v1302
        %v1304 = vpop.f32.mrf.mxu0
        %1305 = vdwg.mxu0
        %v1306 = vsel %vm748, %v1298, -inf
        %1307 = vmax.xlane.f32.xlu0 %v1306
        %v1308 = vpop.xlane.xlu0 %1307
        %v1309 = vsel %vm748, %v1303, -inf
        %1310 = vmax.xlane.f32.xlu0 %v1309
        %v1311 = vpop.xlane.xlu0 %1310
        %v1312 = vsub.f32 %v1298, %v1308
        %v1313 = vsub.f32 %v1303, %v1311
        %v1314 = vmul.f32 %v1312, 1.442695
        %v1315 = vpow.pop %v1314
        %v1316 = vmul.f32 %v1313, 1.442695
        %v1317 = vpow.pop %v1316
        %v1318 = vsel %vm748, %v1315, 0.0
        %1319 = vadd.xlane.f32.xlu0 %v1318
        %v1320 = vpop.xlane.xlu0 %1319
        %v1321 = vsel %vm748, %v1317, 0.0
        %1322 = vadd.xlane.f32.xlu0 %v1321
        %v1323 = vpop.xlane.xlu0 %1322
        %v1324 = vrcp.pop %v1320
        %v1325 = vrcp.pop %v1323
        %v1326 = vmul.f32 %v1315, %v1324
        %v1327 = vmul.f32 %v1317, %v1325
        %1328 = vset.pattern.permute.xlu0 1
        %1329 = vperm.xlu0 %1328, %v775
        %v1330 = vpop.permute.xlu0 %1329
        %1332 = vset.pattern.permute.xlu0 1
        %1333 = vperm.xlu0 %1332, %v776
        %v1334 = vpop.permute.xlu0 %1333
        %v1336 = vmul.f32 %v494, %v1330
        %v1337 = vmul.f32 %v495, %v1334
        %v1338 = vmul.f32 %v1336, 1.442695
        %v1339 = vpow.pop %v1338
        %v1340 = vmul.f32 %v1337, 1.442695
        %v1341 = vpow.pop %v1340
        %1342 = vset.pattern.permute.xlu0 1
        %1343 = vperm.xlu0 %1342, %v777
        %v1344 = vpop.permute.xlu0 %1343
        %1346 = vset.pattern.permute.xlu0 1
        %1347 = vperm.xlu0 %1346, %v778
        %v1348 = vpop.permute.xlu0 %1347
        %v1350 = vmul.f32 %v1344, %v1339
        %v1351 = vmul.f32 %v1348, %v1341
        %v1352 = vld [vmem:[%s384 + $0x1] sm:$0x1]
        %v1353 = vld [vmem:[%s384 + $0x5] sm:$0x1]
        %v1354 = vld [vmem:[%s384 + $0x9] sm:$0x1]
        %v1355 = vld [vmem:[%s384 + $0xd] sm:$0x1]
        %v1356 = vld [vmem:[%s384 + $0x11] sm:$0x1]
        %v1357 = vld [vmem:[%s384 + $0x15] sm:$0x1]
        %v1358 = vld [vmem:[%s384 + $0x19] sm:$0x1]
        %v1359 = vld [vmem:[%s384 + $0x1d] sm:$0x1]
        %v1360 = vld [vmem:[%s384 + $0x21] sm:$0x1]
        %v1361 = vld [vmem:[%s384 + $0x25] sm:$0x1]
        %v1362 = vld [vmem:[%s384 + $0x29] sm:$0x1]
        %v1363 = vld [vmem:[%s384 + $0x2d] sm:$0x1]
        %v1364 = vld [vmem:[%s384 + $0x31] sm:$0x1]
        %v1365 = vld [vmem:[%s384 + $0x35] sm:$0x1]
        %v1366 = vld [vmem:[%s384 + $0x39] sm:$0x1]
        %v1367 = vld [vmem:[%s384 + $0x3d] sm:$0x1]
        %v1384 = vrot.slane %v1353, 7
        %v1385 = vsel %vm586, %v1384, %v1352
        %v1386 = vrot.slane %v1354, 6
        %v1387 = vsel %vm589, %v1386, %v1385
        %v1388 = vrot.slane %v1355, 5
        %v1389 = vsel %vm592, %v1388, %v1387
        %v1390 = vrot.slane %v1356, 4
        %v1391 = vsel %vm595, %v1390, %v1389
        %v1392 = vrot.slane %v1357, 3
        %v1393 = vsel %vm598, %v1392, %v1391
        %v1394 = vrot.slane %v1358, 2
        %v1395 = vsel %vm601, %v1394, %v1393
        %v1396 = vrot.slane %v1359, 1
        %v1397 = vsel %vm604, %v1396, %v1395
        %v1398 = vrot.slane %v1361, 7
        %v1399 = vsel %vm586, %v1398, %v1360
        %v1400 = vrot.slane %v1362, 6
        %v1401 = vsel %vm589, %v1400, %v1399
        %v1402 = vrot.slane %v1363, 5
        %v1403 = vsel %vm592, %v1402, %v1401
        %v1404 = vrot.slane %v1364, 4
        %v1405 = vsel %vm595, %v1404, %v1403
        %v1406 = vrot.slane %v1365, 3
        %v1407 = vsel %vm598, %v1406, %v1405
        %v1408 = vrot.slane %v1366, 2
        %v1409 = vsel %vm601, %v1408, %v1407
        %v1410 = vrot.slane %v1367, 1
        %v1411 = vsel %vm604, %v1410, %v1409
        %v1415 = vsel %vm748, %v1326, 0
        %v1418 = vsel %vm748, %v1327, 0
        %1420 = vmatprep.subr.mxu0 0.0
        %1421 = vmatpush1.msra.mxu0 0.0
        %1422 = vmatprep.subr.mxu0 0.0
        %1423 = vmatpush1.msra.mxu0 0.0
        %1424 = vmatprep.subr.mxu0 0.0
        %1425 = vmatpush1.msra.mxu0 0.0
        %1426 = vmatprep.subr.mxu0 0.0
        %1427 = vmatpush1.msra.mxu0 0.0
        %1428 = vmatprep.subr.mxu0 0.0
        %1429 = vmatpush1.msra.mxu0 0.0
        %1430 = vmatprep.subr.mxu0 0.0
        %1431 = vmatpush1.msra.mxu0 0.0
        %1432 = vmatprep.subr.mxu0 0.0
        %1433 = vmatpush1.msra.mxu0 0.0
        %1434 = vmatprep.subr.mxu0 0.0
        %1435 = vmatpush1.msra.mxu0 0.0
        %1436 = vmatprep.subr.mxu0 0.0
        %1437 = vmatpush1.msra.mxu0 0.0
        %1438 = vmatprep.subr.mxu0 0.0
        %1439 = vmatpush1.msra.mxu0 0.0
        %1440 = vmatprep.subr.mxu0 0.0
        %1441 = vmatpush1.msra.mxu0 0.0
        %1442 = vmatprep.subr.mxu0 0.0
        %1443 = vmatpush1.msra.mxu0 0.0
        %1444 = vmatprep.subr.mxu0 0.0
        %1445 = vmatpush1.msra.mxu0 0.0
        %1446 = vmatprep.subr.mxu0 0.0
        %1447 = vmatpush1.msra.mxu0 0.0
        %1448 = vmatprep.subr.mxu0 0.0
        %1449 = vmatpush1.msra.mxu0 %v1411
        %1450 = vmatprep.subr.mxu0 0.0
        %1451 = vmatpush1.msra.mxu0 %v1397
        %1452 = vmatprep.subr.mxu0 0.0
        %1453 = vmatpush2.msra.mxu0 0.0
        %1454 = vmatprep.subr.mxu0 0.0
        %1455 = vmatpush2.msra.mxu0 0.0
        %1456 = vmatprep.subr.mxu0 0.0
        %1457 = vmatpush2.msra.mxu0 0.0
        %1458 = vmatprep.subr.mxu0 0.0
        %1459 = vmatpush2.msra.mxu0 0.0
        %1460 = vmatprep.subr.mxu0 0.0
        %1461 = vmatpush2.msra.mxu0 0.0
        %1462 = vmatprep.subr.mxu0 0.0
        %1463 = vmatpush2.msra.mxu0 0.0
        %1464 = vmatprep.subr.mxu0 0.0
        %1465 = vmatpush2.msra.mxu0 0.0
        %1466 = vmatprep.subr.mxu0 0.0
        %1467 = vmatpush2.msra.mxu0 0.0
        %1468 = vmatprep.subr.mxu0 0.0
        %1469 = vmatpush2.msra.mxu0 0.0
        %1470 = vmatprep.subr.mxu0 0.0
        %1471 = vmatpush2.msra.mxu0 0.0
        %1472 = vmatprep.subr.mxu0 0.0
        %1473 = vmatpush2.msra.mxu0 0.0
        %1474 = vmatprep.subr.mxu0 0.0
        %1475 = vmatpush2.msra.mxu0 0.0
        %1476 = vmatprep.subr.mxu0 0.0
        %1477 = vmatpush2.msra.mxu0 0.0
        %1478 = vmatprep.subr.mxu0 0.0
        %1479 = vmatpush2.msra.mxu0 0.0
        %1480 = vmatprep.subr.mxu0 0.0
        %1481 = vmatpush2.msra.mxu0 0.0
        %1482 = vmatprep.subr.mxu0 0.0
        %1483 = vmatpush2.msra.mxu0 0.0
        %1484 = vmatprep.mubr.f32.mxu0 0.0
        %1485 = vmatmul.mubr.f32.gmra.mxu0 %v1415
        %v1486 = vpop.f32.mrf.mxu0
        %v1487 = vadd.f32 0.0, %v1486
        %v1488 = vpop.f32.mrf.mxu0
        %1489 = vmatprep.mubr.f32.mxu0 0.0
        %1490 = vmatmul.mubr.f32.gmra.mxu0 %v1418
        %v1491 = vpop.f32.mrf.mxu0
        %v1492 = vadd.f32 0.0, %v1491
        %v1493 = vpop.f32.mrf.mxu0
        %1494 = vdwg.mxu0
        %s1495 = scalar_lea.vmem %s434, 16 [#allocation9]
        %1496 = vst.msk [vmem:[%s1495] sm:$0xff] %vm748, %v1326
        %1497 = vst.msk [vmem:[%s1495 + $0x8] sm:$0xff] %vm748, %v1327
        %s1498 = scalar_lea.vmem %s441, 16 [#allocation11]
        %1499 = vst.msk [vmem:[%s1498] sm:$0xff] %vm748, %v1350
        %1500 = vst.msk [vmem:[%s1498 + $0x8] sm:$0xff] %vm748, %v1351
        %v1503 = vcombine.high %v1487, %v1487
        %v1505 = vunpack.c.l.s4 1966171168
        %v1506 = vunpack.c.0.s8 %v1505
        %v1507 = vlaneseq
        %v1508 = vshrl.u32 %v1507, 7
        %v1509 = vsub.s32 %v1506, %v1508
        %v1510 = vrot.slane %v1487, %v1509
        %v1512 = vunpack.c.l.s4 1966171168
        %v1513 = vunpack.c.0.s8 %v1512
        %v1514 = vlaneseq
        %v1515 = vshrl.u32 %v1514, 7
        %v1516 = vsub.s32 %v1513, %v1515
        %v1517 = vrot.slane %v1503, %v1516
        %v1518 = vcombine.high %v1510, %v1510
        %v1519 = vcombine.high %v1517, %v1517
        %v1521 = vunpack.c.l.s4 1966171168
        %v1522 = vunpack.c.0.s8 %v1521
        %v1523 = vlaneseq
        %v1524 = vshrl.u32 %v1523, 7
        %v1525 = vsub.s32 %v1522, %v1524
        %v1526 = vrot.slane %v1510, %v1525
        %v1528 = vunpack.c.l.s4 1966171168
        %v1529 = vunpack.c.0.s8 %v1528
        %v1530 = vlaneseq
        %v1531 = vshrl.u32 %v1530, 7
        %v1532 = vsub.s32 %v1529, %v1531
        %v1533 = vrot.slane %v1517, %v1532
        %v1535 = vunpack.c.l.s4 1966171168
        %v1536 = vunpack.c.0.s8 %v1535
        %v1537 = vlaneseq
        %v1538 = vshrl.u32 %v1537, 7
        %v1539 = vsub.s32 %v1536, %v1538
        %v1540 = vrot.slane %v1518, %v1539
        %v1542 = vunpack.c.l.s4 1966171168
        %v1543 = vunpack.c.0.s8 %v1542
        %v1544 = vlaneseq
        %v1545 = vshrl.u32 %v1544, 7
        %v1546 = vsub.s32 %v1543, %v1545
        %v1547 = vrot.slane %v1519, %v1546
        %v1548 = vcombine.high %v1526, %v1526
        %v1549 = vcombine.high %v1533, %v1533
        %v1550 = vcombine.high %v1540, %v1540
        %v1551 = vcombine.high %v1547, %v1547
        %v1552 = vcombine.high %v1492, %v1492
        %v1554 = vunpack.c.l.s4 1966171168
        %v1555 = vunpack.c.0.s8 %v1554
        %v1556 = vlaneseq
        %v1557 = vshrl.u32 %v1556, 7
        %v1558 = vsub.s32 %v1555, %v1557
        %v1559 = vrot.slane %v1492, %v1558
        %v1561 = vunpack.c.l.s4 1966171168
        %v1562 = vunpack.c.0.s8 %v1561
        %v1563 = vlaneseq
        %v1564 = vshrl.u32 %v1563, 7
        %v1565 = vsub.s32 %v1562, %v1564
        %v1566 = vrot.slane %v1552, %v1565
        %v1567 = vcombine.high %v1559, %v1559
        %v1568 = vcombine.high %v1566, %v1566
        %v1570 = vunpack.c.l.s4 1966171168
        %v1571 = vunpack.c.0.s8 %v1570
        %v1572 = vlaneseq
        %v1573 = vshrl.u32 %v1572, 7
        %v1574 = vsub.s32 %v1571, %v1573
        %v1575 = vrot.slane %v1559, %v1574
        %v1577 = vunpack.c.l.s4 1966171168
        %v1578 = vunpack.c.0.s8 %v1577
        %v1579 = vlaneseq
        %v1580 = vshrl.u32 %v1579, 7
        %v1581 = vsub.s32 %v1578, %v1580
        %v1582 = vrot.slane %v1566, %v1581
        %v1584 = vunpack.c.l.s4 1966171168
        %v1585 = vunpack.c.0.s8 %v1584
        %v1586 = vlaneseq
        %v1587 = vshrl.u32 %v1586, 7
        %v1588 = vsub.s32 %v1585, %v1587
        %v1589 = vrot.slane %v1567, %v1588
        %v1591 = vunpack.c.l.s4 1966171168
        %v1592 = vunpack.c.0.s8 %v1591
        %v1593 = vlaneseq
        %v1594 = vshrl.u32 %v1593, 7
        %v1595 = vsub.s32 %v1592, %v1594
        %v1596 = vrot.slane %v1568, %v1595
        %v1597 = vcombine.high %v1575, %v1575
        %v1598 = vcombine.high %v1582, %v1582
        %v1599 = vcombine.high %v1589, %v1589
        %v1600 = vcombine.high %v1596, %v1596
        %1617 = vst.msk [vmem:[%s427 + $0x1] sm:$0x1] %vm1070, %v1526
        %1618 = vst.msk [vmem:[%s427 + $0x5] sm:$0x1] %vm1070, %v1540
        %1619 = vst.msk [vmem:[%s427 + $0x9] sm:$0x1] %vm1070, %v1548
        %1620 = vst.msk [vmem:[%s427 + $0xd] sm:$0x1] %vm1070, %v1550
        %1621 = vst.msk [vmem:[%s427 + $0x11] sm:$0x1] %vm1070, %v1533
        %1622 = vst.msk [vmem:[%s427 + $0x15] sm:$0x1] %vm1070, %v1547
        %1623 = vst.msk [vmem:[%s427 + $0x19] sm:$0x1] %vm1070, %v1549
        %1624 = vst.msk [vmem:[%s427 + $0x1d] sm:$0x1] %vm1070, %v1551
        %1625 = vst.msk [vmem:[%s427 + $0x21] sm:$0x1] %vm1070, %v1575
        %1626 = vst.msk [vmem:[%s427 + $0x25] sm:$0x1] %vm1070, %v1589
        %1627 = vst.msk [vmem:[%s427 + $0x29] sm:$0x1] %vm1070, %v1597
        %1628 = vst.msk [vmem:[%s427 + $0x2d] sm:$0x1] %vm1070, %v1599
        %1629 = vst.msk [vmem:[%s427 + $0x31] sm:$0x1] %vm1070, %v1582
        %1630 = vst.msk [vmem:[%s427 + $0x35] sm:$0x1] %vm1070, %v1596
        %1631 = vst.msk [vmem:[%s427 + $0x39] sm:$0x1] %vm1070, %v1598
        %1632 = vst.msk [vmem:[%s427 + $0x3d] sm:$0x1] %vm1070, %v1600
        %v1633 = vld [vmem:[%s366 + $0x2] sm:$0x1]
        %v1634 = vld [vmem:[%s366 + $0x6] sm:$0x1]
        %v1635 = vld [vmem:[%s366 + $0xa] sm:$0x1]
        %v1636 = vld [vmem:[%s366 + $0xe] sm:$0x1]
        %v1637 = vld [vmem:[%s366 + $0x12] sm:$0x1]
        %v1638 = vld [vmem:[%s366 + $0x16] sm:$0x1]
        %v1639 = vld [vmem:[%s366 + $0x1a] sm:$0x1]
        %v1640 = vld [vmem:[%s366 + $0x1e] sm:$0x1]
        %v1641 = vld [vmem:[%s366 + $0x22] sm:$0x1]
        %v1642 = vld [vmem:[%s366 + $0x26] sm:$0x1]
        %v1643 = vld [vmem:[%s366 + $0x2a] sm:$0x1]
        %v1644 = vld [vmem:[%s366 + $0x2e] sm:$0x1]
        %v1645 = vld [vmem:[%s366 + $0x32] sm:$0x1]
        %v1646 = vld [vmem:[%s366 + $0x36] sm:$0x1]
        %v1647 = vld [vmem:[%s366 + $0x3a] sm:$0x1]
        %v1648 = vld [vmem:[%s366 + $0x3e] sm:$0x1]
        %v1649 = vmul.f32 %v1633, 0.17677669
        %v1650 = vmul.f32 %v1634, 0.17677669
        %v1651 = vmul.f32 %v1635, 0.17677669
        %v1652 = vmul.f32 %v1636, 0.17677669
        %v1653 = vmul.f32 %v1637, 0.17677669
        %v1654 = vmul.f32 %v1638, 0.17677669
        %v1655 = vmul.f32 %v1639, 0.17677669
        %v1656 = vmul.f32 %v1640, 0.17677669
        %v1657 = vmul.f32 %v1641, 0.17677669
        %v1658 = vmul.f32 %v1642, 0.17677669
        %v1659 = vmul.f32 %v1643, 0.17677669
        %v1660 = vmul.f32 %v1644, 0.17677669
        %v1661 = vmul.f32 %v1645, 0.17677669
        %v1662 = vmul.f32 %v1646, 0.17677669
        %v1663 = vmul.f32 %v1647, 0.17677669
        %v1664 = vmul.f32 %v1648, 0.17677669
        %v1665 = vld [vmem:[%s375 + $0x2] sm:$0x1]
        %v1666 = vld [vmem:[%s375 + $0x6] sm:$0x1]
        %v1667 = vld [vmem:[%s375 + $0xa] sm:$0x1]
        %v1668 = vld [vmem:[%s375 + $0xe] sm:$0x1]
        %v1669 = vld [vmem:[%s375 + $0x12] sm:$0x1]
        %v1670 = vld [vmem:[%s375 + $0x16] sm:$0x1]
        %v1671 = vld [vmem:[%s375 + $0x1a] sm:$0x1]
        %v1672 = vld [vmem:[%s375 + $0x1e] sm:$0x1]
        %v1673 = vld [vmem:[%s375 + $0x22] sm:$0x1]
        %v1674 = vld [vmem:[%s375 + $0x26] sm:$0x1]
        %v1675 = vld [vmem:[%s375 + $0x2a] sm:$0x1]
        %v1676 = vld [vmem:[%s375 + $0x2e] sm:$0x1]
        %v1677 = vld [vmem:[%s375 + $0x32] sm:$0x1]
        %v1678 = vld [vmem:[%s375 + $0x36] sm:$0x1]
        %v1679 = vld [vmem:[%s375 + $0x3a] sm:$0x1]
        %v1680 = vld [vmem:[%s375 + $0x3e] sm:$0x1]
        %v1697 = vrot.slane %v1650, 7
        %v1698 = vsel %vm586, %v1697, %v1649
        %v1699 = vrot.slane %v1651, 6
        %v1700 = vsel %vm589, %v1699, %v1698
        %v1701 = vrot.slane %v1652, 5
        %v1702 = vsel %vm592, %v1701, %v1700
        %v1703 = vrot.slane %v1653, 4
        %v1704 = vsel %vm595, %v1703, %v1702
        %v1705 = vrot.slane %v1654, 3
        %v1706 = vsel %vm598, %v1705, %v1704
        %v1707 = vrot.slane %v1655, 2
        %v1708 = vsel %vm601, %v1707, %v1706
        %v1709 = vrot.slane %v1656, 1
        %v1710 = vsel %vm604, %v1709, %v1708
        %v1711 = vrot.slane %v1658, 7
        %v1712 = vsel %vm586, %v1711, %v1657
        %v1713 = vrot.slane %v1659, 6
        %v1714 = vsel %vm589, %v1713, %v1712
        %v1715 = vrot.slane %v1660, 5
        %v1716 = vsel %vm592, %v1715, %v1714
        %v1717 = vrot.slane %v1661, 4
        %v1718 = vsel %vm595, %v1717, %v1716
        %v1719 = vrot.slane %v1662, 3
        %v1720 = vsel %vm598, %v1719, %v1718
        %v1721 = vrot.slane %v1663, 2
        %v1722 = vsel %vm601, %v1721, %v1720
        %v1723 = vrot.slane %v1664, 1
        %v1724 = vsel %vm604, %v1723, %v1722
        %v1741 = vrot.slane %v1666, 7
        %v1742 = vsel %vm586, %v1741, %v1665
        %v1743 = vrot.slane %v1667, 6
        %v1744 = vsel %vm589, %v1743, %v1742
        %v1745 = vrot.slane %v1668, 5
        %v1746 = vsel %vm592, %v1745, %v1744
        %v1747 = vrot.slane %v1669, 4
        %v1748 = vsel %vm595, %v1747, %v1746
        %v1749 = vrot.slane %v1670, 3
        %v1750 = vsel %vm598, %v1749, %v1748
        %v1751 = vrot.slane %v1671, 2
        %v1752 = vsel %vm601, %v1751, %v1750
        %v1753 = vrot.slane %v1672, 1
        %v1754 = vsel %vm604, %v1753, %v1752
        %v1755 = vrot.slane %v1674, 7
        %v1756 = vsel %vm586, %v1755, %v1673
        %v1757 = vrot.slane %v1675, 6
        %v1758 = vsel %vm589, %v1757, %v1756
        %v1759 = vrot.slane %v1676, 5
        %v1760 = vsel %vm592, %v1759, %v1758
        %v1761 = vrot.slane %v1677, 4
        %v1762 = vsel %vm595, %v1761, %v1760
        %v1763 = vrot.slane %v1678, 3
        %v1764 = vsel %vm598, %v1763, %v1762
        %v1765 = vrot.slane %v1679, 2
        %v1766 = vsel %vm601, %v1765, %v1764
        %v1767 = vrot.slane %v1680, 1
        %v1768 = vsel %vm604, %v1767, %v1766
        %v1769 = vsel %vm664, %v1710, 0
        %v1771 = vsel %vm664, %v1724, 0
        %v1773 = vsel %vm664, %v1754, 0
        %v1775 = vsel %vm664, %v1768, 0
        %1777 = vmatprep.subr.mxu0 0.0
        %1778 = vmatpush1.xpose.msra.mxu0 0.0
        %1779 = vmatprep.subr.mxu0 0.0
        %1780 = vmatpush1.xpose.msra.mxu0 0.0
        %1781 = vmatprep.subr.mxu0 0.0
        %1782 = vmatpush1.xpose.msra.mxu0 0.0
        %1783 = vmatprep.subr.mxu0 0.0
        %1784 = vmatpush1.xpose.msra.mxu0 0.0
        %1785 = vmatprep.subr.mxu0 0.0
        %1786 = vmatpush1.xpose.msra.mxu0 0.0
        %1787 = vmatprep.subr.mxu0 0.0
        %1788 = vmatpush1.xpose.msra.mxu0 0.0
        %1789 = vmatprep.subr.mxu0 0.0
        %1790 = vmatpush1.xpose.msra.mxu0 0.0
        %1791 = vmatprep.subr.mxu0 0.0
        %1792 = vmatpush1.xpose.msra.mxu0 0.0
        %1793 = vmatprep.subr.mxu0 0.0
        %1794 = vmatpush1.xpose.msra.mxu0 0.0
        %1795 = vmatprep.subr.mxu0 0.0
        %1796 = vmatpush1.xpose.msra.mxu0 0.0
        %1797 = vmatprep.subr.mxu0 0.0
        %1798 = vmatpush1.xpose.msra.mxu0 0.0
        %1799 = vmatprep.subr.mxu0 0.0
        %1800 = vmatpush1.xpose.msra.mxu0 0.0
        %1801 = vmatprep.subr.mxu0 0.0
        %1802 = vmatpush1.xpose.msra.mxu0 0.0
        %1803 = vmatprep.subr.mxu0 0.0
        %1804 = vmatpush1.xpose.msra.mxu0 0.0
        %1805 = vmatprep.subr.mxu0 0.0
        %1806 = vmatpush1.xpose.msra.mxu0 %v1775
        %1807 = vmatprep.subr.mxu0 0.0
        %1808 = vmatpush1.xpose.msra.mxu0 %v1773
        %1809 = vmatprep.subr.mxu0 0.0
        %1810 = vmatpush2.xpose.msra.mxu0 0.0
        %1811 = vmatprep.subr.mxu0 0.0
        %1812 = vmatpush2.xpose.msra.mxu0 0.0
        %1813 = vmatprep.subr.mxu0 0.0
        %1814 = vmatpush2.xpose.msra.mxu0 0.0
        %1815 = vmatprep.subr.mxu0 0.0
        %1816 = vmatpush2.xpose.msra.mxu0 0.0
        %1817 = vmatprep.subr.mxu0 0.0
        %1818 = vmatpush2.xpose.msra.mxu0 0.0
        %1819 = vmatprep.subr.mxu0 0.0
        %1820 = vmatpush2.xpose.msra.mxu0 0.0
        %1821 = vmatprep.subr.mxu0 0.0
        %1822 = vmatpush2.xpose.msra.mxu0 0.0
        %1823 = vmatprep.subr.mxu0 0.0
        %1824 = vmatpush2.xpose.msra.mxu0 0.0
        %1825 = vmatprep.subr.mxu0 0.0
        %1826 = vmatpush2.xpose.msra.mxu0 0.0
        %1827 = vmatprep.subr.mxu0 0.0
        %1828 = vmatpush2.xpose.msra.mxu0 0.0
        %1829 = vmatprep.subr.mxu0 0.0
        %1830 = vmatpush2.xpose.msra.mxu0 0.0
        %1831 = vmatprep.subr.mxu0 0.0
        %1832 = vmatpush2.xpose.msra.mxu0 0.0
        %1833 = vmatprep.subr.mxu0 0.0
        %1834 = vmatpush2.xpose.msra.mxu0 0.0
        %1835 = vmatprep.subr.mxu0 0.0
        %1836 = vmatpush2.xpose.msra.mxu0 0.0
        %1837 = vmatprep.subr.mxu0 0.0
        %1838 = vmatpush2.xpose.msra.mxu0 0.0
        %1839 = vmatprep.subr.mxu0 0.0
        %1840 = vmatpush2.xpose.msra.mxu0 0.0
        %1841 = vmatprep.mubr.f32.mxu0 0.0
        %1842 = vmatmul.mubr.f32.gmra.mxu0 %v1769
        %v1843 = vpop.f32.mrf.mxu0
        %v1844 = vadd.f32 %v488, %v1843
        %v1845 = vpop.f32.mrf.mxu0
        %1846 = vmatprep.mubr.f32.mxu0 0.0
        %1847 = vmatmul.mubr.f32.gmra.mxu0 %v1771
        %v1848 = vpop.f32.mrf.mxu0
        %v1849 = vadd.f32 %v489, %v1848
        %v1850 = vpop.f32.mrf.mxu0
        %1851 = vdwg.mxu0
        %v1852 = vsel %vm748, %v1844, -inf
        %1853 = vmax.xlane.f32.xlu0 %v1852
        %v1854 = vpop.xlane.xlu0 %1853
        %v1855 = vsel %vm748, %v1849, -inf
        %1856 = vmax.xlane.f32.xlu0 %v1855
        %v1857 = vpop.xlane.xlu0 %1856
        %v1858 = vsub.f32 %v1844, %v1854
        %v1859 = vsub.f32 %v1849, %v1857
        %v1860 = vmul.f32 %v1858, 1.442695
        %v1861 = vpow.pop %v1860
        %v1862 = vmul.f32 %v1859, 1.442695
        %v1863 = vpow.pop %v1862
        %v1864 = vsel %vm748, %v1861, 0.0
        %1865 = vadd.xlane.f32.xlu0 %v1864
        %v1866 = vpop.xlane.xlu0 %1865
        %v1867 = vsel %vm748, %v1863, 0.0
        %1868 = vadd.xlane.f32.xlu0 %v1867
        %v1869 = vpop.xlane.xlu0 %1868
        %v1870 = vrcp.pop %v1866
        %v1871 = vrcp.pop %v1869
        %v1872 = vmul.f32 %v1861, %v1870
        %v1873 = vmul.f32 %v1863, %v1871
        %1874 = vset.pattern.permute.xlu0 2
        %1875 = vperm.xlu0 %1874, %v775
        %v1876 = vpop.permute.xlu0 %1875
        %1878 = vset.pattern.permute.xlu0 2
        %1879 = vperm.xlu0 %1878, %v776
        %v1880 = vpop.permute.xlu0 %1879
        %v1882 = vmul.f32 %v494, %v1876
        %v1883 = vmul.f32 %v495, %v1880
        %v1884 = vmul.f32 %v1882, 1.442695
        %v1885 = vpow.pop %v1884
        %v1886 = vmul.f32 %v1883, 1.442695
        %v1887 = vpow.pop %v1886
        %1888 = vset.pattern.permute.xlu0 2
        %1889 = vperm.xlu0 %1888, %v777
        %v1890 = vpop.permute.xlu0 %1889
        %1892 = vset.pattern.permute.xlu0 2
        %1893 = vperm.xlu0 %1892, %v778
        %v1894 = vpop.permute.xlu0 %1893
        %v1896 = vmul.f32 %v1890, %v1885
        %v1897 = vmul.f32 %v1894, %v1887
        %v1898 = vld [vmem:[%s384 + $0x2] sm:$0x1]
        %v1899 = vld [vmem:[%s384 + $0x6] sm:$0x1]
        %v1900 = vld [vmem:[%s384 + $0xa] sm:$0x1]
        %v1901 = vld [vmem:[%s384 + $0xe] sm:$0x1]
        %v1902 = vld [vmem:[%s384 + $0x12] sm:$0x1]
        %v1903 = vld [vmem:[%s384 + $0x16] sm:$0x1]
        %v1904 = vld [vmem:[%s384 + $0x1a] sm:$0x1]
        %v1905 = vld [vmem:[%s384 + $0x1e] sm:$0x1]
        %v1906 = vld [vmem:[%s384 + $0x22] sm:$0x1]
        %v1907 = vld [vmem:[%s384 + $0x26] sm:$0x1]
        %v1908 = vld [vmem:[%s384 + $0x2a] sm:$0x1]
        %v1909 = vld [vmem:[%s384 + $0x2e] sm:$0x1]
        %v1910 = vld [vmem:[%s384 + $0x32] sm:$0x1]
        %v1911 = vld [vmem:[%s384 + $0x36] sm:$0x1]
        %v1912 = vld [vmem:[%s384 + $0x3a] sm:$0x1]
        %v1913 = vld [vmem:[%s384 + $0x3e] sm:$0x1]
        %v1930 = vrot.slane %v1899, 7
        %v1931 = vsel %vm586, %v1930, %v1898
        %v1932 = vrot.slane %v1900, 6
        %v1933 = vsel %vm589, %v1932, %v1931
        %v1934 = vrot.slane %v1901, 5
        %v1935 = vsel %vm592, %v1934, %v1933
        %v1936 = vrot.slane %v1902, 4
        %v1937 = vsel %vm595, %v1936, %v1935
        %v1938 = vrot.slane %v1903, 3
        %v1939 = vsel %vm598, %v1938, %v1937
        %v1940 = vrot.slane %v1904, 2
        %v1941 = vsel %vm601, %v1940, %v1939
        %v1942 = vrot.slane %v1905, 1
        %v1943 = vsel %vm604, %v1942, %v1941
        %v1944 = vrot.slane %v1907, 7
        %v1945 = vsel %vm586, %v1944, %v1906
        %v1946 = vrot.slane %v1908, 6
        %v1947 = vsel %vm589, %v1946, %v1945
        %v1948 = vrot.slane %v1909, 5
        %v1949 = vsel %vm592, %v1948, %v1947
        %v1950 = vrot.slane %v1910, 4
        %v1951 = vsel %vm595, %v1950, %v1949
        %v1952 = vrot.slane %v1911, 3
        %v1953 = vsel %vm598, %v1952, %v1951
        %v1954 = vrot.slane %v1912, 2
        %v1955 = vsel %vm601, %v1954, %v1953
        %v1956 = vrot.slane %v1913, 1
        %v1957 = vsel %vm604, %v1956, %v1955
        %v1961 = vsel %vm748, %v1872, 0
        %v1964 = vsel %vm748, %v1873, 0
        %1966 = vmatprep.subr.mxu0 0.0
        %1967 = vmatpush1.msra.mxu0 0.0
        %1968 = vmatprep.subr.mxu0 0.0
        %1969 = vmatpush1.msra.mxu0 0.0
        %1970 = vmatprep.subr.mxu0 0.0
        %1971 = vmatpush1.msra.mxu0 0.0
        %1972 = vmatprep.subr.mxu0 0.0
        %1973 = vmatpush1.msra.mxu0 0.0
        %1974 = vmatprep.subr.mxu0 0.0
        %1975 = vmatpush1.msra.mxu0 0.0
        %1976 = vmatprep.subr.mxu0 0.0
        %1977 = vmatpush1.msra.mxu0 0.0
        %1978 = vmatprep.subr.mxu0 0.0
        %1979 = vmatpush1.msra.mxu0 0.0
        %1980 = vmatprep.subr.mxu0 0.0
        %1981 = vmatpush1.msra.mxu0 0.0
        %1982 = vmatprep.subr.mxu0 0.0
        %1983 = vmatpush1.msra.mxu0 0.0
        %1984 = vmatprep.subr.mxu0 0.0
        %1985 = vmatpush1.msra.mxu0 0.0
        %1986 = vmatprep.subr.mxu0 0.0
        %1987 = vmatpush1.msra.mxu0 0.0
        %1988 = vmatprep.subr.mxu0 0.0
        %1989 = vmatpush1.msra.mxu0 0.0
        %1990 = vmatprep.subr.mxu0 0.0
        %1991 = vmatpush1.msra.mxu0 0.0
        %1992 = vmatprep.subr.mxu0 0.0
        %1993 = vmatpush1.msra.mxu0 0.0
        %1994 = vmatprep.subr.mxu0 0.0
        %1995 = vmatpush1.msra.mxu0 %v1957
        %1996 = vmatprep.subr.mxu0 0.0
        %1997 = vmatpush1.msra.mxu0 %v1943
        %1998 = vmatprep.subr.mxu0 0.0
        %1999 = vmatpush2.msra.mxu0 0.0
        %2000 = vmatprep.subr.mxu0 0.0
        %2001 = vmatpush2.msra.mxu0 0.0
        %2002 = vmatprep.subr.mxu0 0.0
        %2003 = vmatpush2.msra.mxu0 0.0
        %2004 = vmatprep.subr.mxu0 0.0
        %2005 = vmatpush2.msra.mxu0 0.0
        %2006 = vmatprep.subr.mxu0 0.0
        %2007 = vmatpush2.msra.mxu0 0.0
        %2008 = vmatprep.subr.mxu0 0.0
        %2009 = vmatpush2.msra.mxu0 0.0
        %2010 = vmatprep.subr.mxu0 0.0
        %2011 = vmatpush2.msra.mxu0 0.0
        %2012 = vmatprep.subr.mxu0 0.0
        %2013 = vmatpush2.msra.mxu0 0.0
        %2014 = vmatprep.subr.mxu0 0.0
        %2015 = vmatpush2.msra.mxu0 0.0
        %2016 = vmatprep.subr.mxu0 0.0
        %2017 = vmatpush2.msra.mxu0 0.0
        %2018 = vmatprep.subr.mxu0 0.0
        %2019 = vmatpush2.msra.mxu0 0.0
        %2020 = vmatprep.subr.mxu0 0.0
        %2021 = vmatpush2.msra.mxu0 0.0
        %2022 = vmatprep.subr.mxu0 0.0
        %2023 = vmatpush2.msra.mxu0 0.0
        %2024 = vmatprep.subr.mxu0 0.0
        %2025 = vmatpush2.msra.mxu0 0.0
        %2026 = vmatprep.subr.mxu0 0.0
        %2027 = vmatpush2.msra.mxu0 0.0
        %2028 = vmatprep.subr.mxu0 0.0
        %2029 = vmatpush2.msra.mxu0 0.0
        %2030 = vmatprep.mubr.f32.mxu0 0.0
        %2031 = vmatmul.mubr.f32.gmra.mxu0 %v1961
        %v2032 = vpop.f32.mrf.mxu0
        %v2033 = vadd.f32 0.0, %v2032
        %v2034 = vpop.f32.mrf.mxu0
        %2035 = vmatprep.mubr.f32.mxu0 0.0
        %2036 = vmatmul.mubr.f32.gmra.mxu0 %v1964
        %v2037 = vpop.f32.mrf.mxu0
        %v2038 = vadd.f32 0.0, %v2037
        %v2039 = vpop.f32.mrf.mxu0
        %2040 = vdwg.mxu0
        %s2041 = scalar_lea.vmem %s434, 32 [#allocation9]
        %2042 = vst.msk [vmem:[%s2041] sm:$0xff] %vm748, %v1872
        %2043 = vst.msk [vmem:[%s2041 + $0x8] sm:$0xff] %vm748, %v1873
        %s2044 = scalar_lea.vmem %s441, 32 [#allocation11]
        %2045 = vst.msk [vmem:[%s2044] sm:$0xff] %vm748, %v1896
        %2046 = vst.msk [vmem:[%s2044 + $0x8] sm:$0xff] %vm748, %v1897
        %v2049 = vcombine.high %v2033, %v2033
        %v2051 = vunpack.c.l.s4 1966171168
        %v2052 = vunpack.c.0.s8 %v2051
        %v2053 = vlaneseq
        %v2054 = vshrl.u32 %v2053, 7
        %v2055 = vsub.s32 %v2052, %v2054
        %v2056 = vrot.slane %v2033, %v2055
        %v2058 = vunpack.c.l.s4 1966171168
        %v2059 = vunpack.c.0.s8 %v2058
        %v2060 = vlaneseq
        %v2061 = vshrl.u32 %v2060, 7
        %v2062 = vsub.s32 %v2059, %v2061
        %v2063 = vrot.slane %v2049, %v2062
        %v2064 = vcombine.high %v2056, %v2056
        %v2065 = vcombine.high %v2063, %v2063
        %v2067 = vunpack.c.l.s4 1966171168
        %v2068 = vunpack.c.0.s8 %v2067
        %v2069 = vlaneseq
        %v2070 = vshrl.u32 %v2069, 7
        %v2071 = vsub.s32 %v2068, %v2070
        %v2072 = vrot.slane %v2056, %v2071
        %v2074 = vunpack.c.l.s4 1966171168
        %v2075 = vunpack.c.0.s8 %v2074
        %v2076 = vlaneseq
        %v2077 = vshrl.u32 %v2076, 7
        %v2078 = vsub.s32 %v2075, %v2077
        %v2079 = vrot.slane %v2063, %v2078
        %v2081 = vunpack.c.l.s4 1966171168
        %v2082 = vunpack.c.0.s8 %v2081
        %v2083 = vlaneseq
        %v2084 = vshrl.u32 %v2083, 7
        %v2085 = vsub.s32 %v2082, %v2084
        %v2086 = vrot.slane %v2064, %v2085
        %v2088 = vunpack.c.l.s4 1966171168
        %v2089 = vunpack.c.0.s8 %v2088
        %v2090 = vlaneseq
        %v2091 = vshrl.u32 %v2090, 7
        %v2092 = vsub.s32 %v2089, %v2091
        %v2093 = vrot.slane %v2065, %v2092
        %v2094 = vcombine.high %v2072, %v2072
        %v2095 = vcombine.high %v2079, %v2079
        %v2096 = vcombine.high %v2086, %v2086
        %v2097 = vcombine.high %v2093, %v2093
        %v2098 = vcombine.high %v2038, %v2038
        %v2100 = vunpack.c.l.s4 1966171168
        %v2101 = vunpack.c.0.s8 %v2100
        %v2102 = vlaneseq
        %v2103 = vshrl.u32 %v2102, 7
        %v2104 = vsub.s32 %v2101, %v2103
        %v2105 = vrot.slane %v2038, %v2104
        %v2107 = vunpack.c.l.s4 1966171168
        %v2108 = vunpack.c.0.s8 %v2107
        %v2109 = vlaneseq
        %v2110 = vshrl.u32 %v2109, 7
        %v2111 = vsub.s32 %v2108, %v2110
        %v2112 = vrot.slane %v2098, %v2111
        %v2113 = vcombine.high %v2105, %v2105
        %v2114 = vcombine.high %v2112, %v2112
        %v2116 = vunpack.c.l.s4 1966171168
        %v2117 = vunpack.c.0.s8 %v2116
        %v2118 = vlaneseq
        %v2119 = vshrl.u32 %v2118, 7
        %v2120 = vsub.s32 %v2117, %v2119
        %v2121 = vrot.slane %v2105, %v2120
        %v2123 = vunpack.c.l.s4 1966171168
        %v2124 = vunpack.c.0.s8 %v2123
        %v2125 = vlaneseq
        %v2126 = vshrl.u32 %v2125, 7
        %v2127 = vsub.s32 %v2124, %v2126
        %v2128 = vrot.slane %v2112, %v2127
        %v2130 = vunpack.c.l.s4 1966171168
        %v2131 = vunpack.c.0.s8 %v2130
        %v2132 = vlaneseq
        %v2133 = vshrl.u32 %v2132, 7
        %v2134 = vsub.s32 %v2131, %v2133
        %v2135 = vrot.slane %v2113, %v2134
        %v2137 = vunpack.c.l.s4 1966171168
        %v2138 = vunpack.c.0.s8 %v2137
        %v2139 = vlaneseq
        %v2140 = vshrl.u32 %v2139, 7
        %v2141 = vsub.s32 %v2138, %v2140
        %v2142 = vrot.slane %v2114, %v2141
        %v2143 = vcombine.high %v2121, %v2121
        %v2144 = vcombine.high %v2128, %v2128
        %v2145 = vcombine.high %v2135, %v2135
        %v2146 = vcombine.high %v2142, %v2142
        %2163 = vst.msk [vmem:[%s427 + $0x2] sm:$0x1] %vm1070, %v2072
        %2164 = vst.msk [vmem:[%s427 + $0x6] sm:$0x1] %vm1070, %v2086
        %2165 = vst.msk [vmem:[%s427 + $0xa] sm:$0x1] %vm1070, %v2094
        %2166 = vst.msk [vmem:[%s427 + $0xe] sm:$0x1] %vm1070, %v2096
        %2167 = vst.msk [vmem:[%s427 + $0x12] sm:$0x1] %vm1070, %v2079
        %2168 = vst.msk [vmem:[%s427 + $0x16] sm:$0x1] %vm1070, %v2093
        %2169 = vst.msk [vmem:[%s427 + $0x1a] sm:$0x1] %vm1070, %v2095
        %2170 = vst.msk [vmem:[%s427 + $0x1e] sm:$0x1] %vm1070, %v2097
        %2171 = vst.msk [vmem:[%s427 + $0x22] sm:$0x1] %vm1070, %v2121
        %2172 = vst.msk [vmem:[%s427 + $0x26] sm:$0x1] %vm1070, %v2135
        %2173 = vst.msk [vmem:[%s427 + $0x2a] sm:$0x1] %vm1070, %v2143
        %2174 = vst.msk [vmem:[%s427 + $0x2e] sm:$0x1] %vm1070, %v2145
        %2175 = vst.msk [vmem:[%s427 + $0x32] sm:$0x1] %vm1070, %v2128
        %2176 = vst.msk [vmem:[%s427 + $0x36] sm:$0x1] %vm1070, %v2142
        %2177 = vst.msk [vmem:[%s427 + $0x3a] sm:$0x1] %vm1070, %v2144
        %2178 = vst.msk [vmem:[%s427 + $0x3e] sm:$0x1] %vm1070, %v2146
        %v2179 = vld [vmem:[%s366 + $0x3] sm:$0x1]
        %v2180 = vld [vmem:[%s366 + $0x7] sm:$0x1]
        %v2181 = vld [vmem:[%s366 + $0xb] sm:$0x1]
        %v2182 = vld [vmem:[%s366 + $0xf] sm:$0x1]
        %v2183 = vld [vmem:[%s366 + $0x13] sm:$0x1]
        %v2184 = vld [vmem:[%s366 + $0x17] sm:$0x1]
        %v2185 = vld [vmem:[%s366 + $0x1b] sm:$0x1]
        %v2186 = vld [vmem:[%s366 + $0x1f] sm:$0x1]
        %v2187 = vld [vmem:[%s366 + $0x23] sm:$0x1]
        %v2188 = vld [vmem:[%s366 + $0x27] sm:$0x1]
        %v2189 = vld [vmem:[%s366 + $0x2b] sm:$0x1]
        %v2190 = vld [vmem:[%s366 + $0x2f] sm:$0x1]
        %v2191 = vld [vmem:[%s366 + $0x33] sm:$0x1]
        %v2192 = vld [vmem:[%s366 + $0x37] sm:$0x1]
        %v2193 = vld [vmem:[%s366 + $0x3b] sm:$0x1]
        %v2194 = vld [vmem:[%s366 + $0x3f] sm:$0x1]
        %v2195 = vmul.f32 %v2179, 0.17677669
        %v2196 = vmul.f32 %v2180, 0.17677669
        %v2197 = vmul.f32 %v2181, 0.17677669
        %v2198 = vmul.f32 %v2182, 0.17677669
        %v2199 = vmul.f32 %v2183, 0.17677669
        %v2200 = vmul.f32 %v2184, 0.17677669
        %v2201 = vmul.f32 %v2185, 0.17677669
        %v2202 = vmul.f32 %v2186, 0.17677669
        %v2203 = vmul.f32 %v2187, 0.17677669
        %v2204 = vmul.f32 %v2188, 0.17677669
        %v2205 = vmul.f32 %v2189, 0.17677669
        %v2206 = vmul.f32 %v2190, 0.17677669
        %v2207 = vmul.f32 %v2191, 0.17677669
        %v2208 = vmul.f32 %v2192, 0.17677669
        %v2209 = vmul.f32 %v2193, 0.17677669
        %v2210 = vmul.f32 %v2194, 0.17677669
        %v2211 = vld [vmem:[%s375 + $0x3] sm:$0x1]
        %v2212 = vld [vmem:[%s375 + $0x7] sm:$0x1]
        %v2213 = vld [vmem:[%s375 + $0xb] sm:$0x1]
        %v2214 = vld [vmem:[%s375 + $0xf] sm:$0x1]
        %v2215 = vld [vmem:[%s375 + $0x13] sm:$0x1]
        %v2216 = vld [vmem:[%s375 + $0x17] sm:$0x1]
        %v2217 = vld [vmem:[%s375 + $0x1b] sm:$0x1]
        %v2218 = vld [vmem:[%s375 + $0x1f] sm:$0x1]
        %v2219 = vld [vmem:[%s375 + $0x23] sm:$0x1]
        %v2220 = vld [vmem:[%s375 + $0x27] sm:$0x1]
        %v2221 = vld [vmem:[%s375 + $0x2b] sm:$0x1]
        %v2222 = vld [vmem:[%s375 + $0x2f] sm:$0x1]
        %v2223 = vld [vmem:[%s375 + $0x33] sm:$0x1]
        %v2224 = vld [vmem:[%s375 + $0x37] sm:$0x1]
        %v2225 = vld [vmem:[%s375 + $0x3b] sm:$0x1]
        %v2226 = vld [vmem:[%s375 + $0x3f] sm:$0x1]
        %v2243 = vrot.slane %v2196, 7
        %v2244 = vsel %vm586, %v2243, %v2195
        %v2245 = vrot.slane %v2197, 6
        %v2246 = vsel %vm589, %v2245, %v2244
        %v2247 = vrot.slane %v2198, 5
        %v2248 = vsel %vm592, %v2247, %v2246
        %v2249 = vrot.slane %v2199, 4
        %v2250 = vsel %vm595, %v2249, %v2248
        %v2251 = vrot.slane %v2200, 3
        %v2252 = vsel %vm598, %v2251, %v2250
        %v2253 = vrot.slane %v2201, 2
        %v2254 = vsel %vm601, %v2253, %v2252
        %v2255 = vrot.slane %v2202, 1
        %v2256 = vsel %vm604, %v2255, %v2254
        %v2257 = vrot.slane %v2204, 7
        %v2258 = vsel %vm586, %v2257, %v2203
        %v2259 = vrot.slane %v2205, 6
        %v2260 = vsel %vm589, %v2259, %v2258
        %v2261 = vrot.slane %v2206, 5
        %v2262 = vsel %vm592, %v2261, %v2260
        %v2263 = vrot.slane %v2207, 4
        %v2264 = vsel %vm595, %v2263, %v2262
        %v2265 = vrot.slane %v2208, 3
        %v2266 = vsel %vm598, %v2265, %v2264
        %v2267 = vrot.slane %v2209, 2
        %v2268 = vsel %vm601, %v2267, %v2266
        %v2269 = vrot.slane %v2210, 1
        %v2270 = vsel %vm604, %v2269, %v2268
        %v2287 = vrot.slane %v2212, 7
        %v2288 = vsel %vm586, %v2287, %v2211
        %v2289 = vrot.slane %v2213, 6
        %v2290 = vsel %vm589, %v2289, %v2288
        %v2291 = vrot.slane %v2214, 5
        %v2292 = vsel %vm592, %v2291, %v2290
        %v2293 = vrot.slane %v2215, 4
        %v2294 = vsel %vm595, %v2293, %v2292
        %v2295 = vrot.slane %v2216, 3
        %v2296 = vsel %vm598, %v2295, %v2294
        %v2297 = vrot.slane %v2217, 2
        %v2298 = vsel %vm601, %v2297, %v2296
        %v2299 = vrot.slane %v2218, 1
        %v2300 = vsel %vm604, %v2299, %v2298
        %v2301 = vrot.slane %v2220, 7
        %v2302 = vsel %vm586, %v2301, %v2219
        %v2303 = vrot.slane %v2221, 6
        %v2304 = vsel %vm589, %v2303, %v2302
        %v2305 = vrot.slane %v2222, 5
        %v2306 = vsel %vm592, %v2305, %v2304
        %v2307 = vrot.slane %v2223, 4
        %v2308 = vsel %vm595, %v2307, %v2306
        %v2309 = vrot.slane %v2224, 3
        %v2310 = vsel %vm598, %v2309, %v2308
        %v2311 = vrot.slane %v2225, 2
        %v2312 = vsel %vm601, %v2311, %v2310
        %v2313 = vrot.slane %v2226, 1
        %v2314 = vsel %vm604, %v2313, %v2312
        %v2315 = vsel %vm664, %v2256, 0
        %v2317 = vsel %vm664, %v2270, 0
        %v2319 = vsel %vm664, %v2300, 0
        %v2321 = vsel %vm664, %v2314, 0
        %2323 = vmatprep.subr.mxu0 0.0
        %2324 = vmatpush1.xpose.msra.mxu0 0.0
        %2325 = vmatprep.subr.mxu0 0.0
        %2326 = vmatpush1.xpose.msra.mxu0 0.0
        %2327 = vmatprep.subr.mxu0 0.0
        %2328 = vmatpush1.xpose.msra.mxu0 0.0
        %2329 = vmatprep.subr.mxu0 0.0
        %2330 = vmatpush1.xpose.msra.mxu0 0.0
        %2331 = vmatprep.subr.mxu0 0.0
        %2332 = vmatpush1.xpose.msra.mxu0 0.0
        %2333 = vmatprep.subr.mxu0 0.0
        %2334 = vmatpush1.xpose.msra.mxu0 0.0
        %2335 = vmatprep.subr.mxu0 0.0
        %2336 = vmatpush1.xpose.msra.mxu0 0.0
        %2337 = vmatprep.subr.mxu0 0.0
        %2338 = vmatpush1.xpose.msra.mxu0 0.0
        %2339 = vmatprep.subr.mxu0 0.0
        %2340 = vmatpush1.xpose.msra.mxu0 0.0
        %2341 = vmatprep.subr.mxu0 0.0
        %2342 = vmatpush1.xpose.msra.mxu0 0.0
        %2343 = vmatprep.subr.mxu0 0.0
        %2344 = vmatpush1.xpose.msra.mxu0 0.0
        %2345 = vmatprep.subr.mxu0 0.0
        %2346 = vmatpush1.xpose.msra.mxu0 0.0
        %2347 = vmatprep.subr.mxu0 0.0
        %2348 = vmatpush1.xpose.msra.mxu0 0.0
        %2349 = vmatprep.subr.mxu0 0.0
        %2350 = vmatpush1.xpose.msra.mxu0 0.0
        %2351 = vmatprep.subr.mxu0 0.0
        %2352 = vmatpush1.xpose.msra.mxu0 %v2321
        %2353 = vmatprep.subr.mxu0 0.0
        %2354 = vmatpush1.xpose.msra.mxu0 %v2319
        %2355 = vmatprep.subr.mxu0 0.0
        %2356 = vmatpush2.xpose.msra.mxu0 0.0
        %2357 = vmatprep.subr.mxu0 0.0
        %2358 = vmatpush2.xpose.msra.mxu0 0.0
        %2359 = vmatprep.subr.mxu0 0.0
        %2360 = vmatpush2.xpose.msra.mxu0 0.0
        %2361 = vmatprep.subr.mxu0 0.0
        %2362 = vmatpush2.xpose.msra.mxu0 0.0
        %2363 = vmatprep.subr.mxu0 0.0
        %2364 = vmatpush2.xpose.msra.mxu0 0.0
        %2365 = vmatprep.subr.mxu0 0.0
        %2366 = vmatpush2.xpose.msra.mxu0 0.0
        %2367 = vmatprep.subr.mxu0 0.0
        %2368 = vmatpush2.xpose.msra.mxu0 0.0
        %2369 = vmatprep.subr.mxu0 0.0
        %2370 = vmatpush2.xpose.msra.mxu0 0.0
        %2371 = vmatprep.subr.mxu0 0.0
        %2372 = vmatpush2.xpose.msra.mxu0 0.0
        %2373 = vmatprep.subr.mxu0 0.0
        %2374 = vmatpush2.xpose.msra.mxu0 0.0
        %2375 = vmatprep.subr.mxu0 0.0
        %2376 = vmatpush2.xpose.msra.mxu0 0.0
        %2377 = vmatprep.subr.mxu0 0.0
        %2378 = vmatpush2.xpose.msra.mxu0 0.0
        %2379 = vmatprep.subr.mxu0 0.0
        %2380 = vmatpush2.xpose.msra.mxu0 0.0
        %2381 = vmatprep.subr.mxu0 0.0
        %2382 = vmatpush2.xpose.msra.mxu0 0.0
        %2383 = vmatprep.subr.mxu0 0.0
        %2384 = vmatpush2.xpose.msra.mxu0 0.0
        %2385 = vmatprep.subr.mxu0 0.0
        %2386 = vmatpush2.xpose.msra.mxu0 0.0
        %2387 = vmatprep.mubr.f32.mxu0 0.0
        %2388 = vmatmul.mubr.f32.gmra.mxu0 %v2315
        %v2389 = vpop.f32.mrf.mxu0
        %v2390 = vadd.f32 %v488, %v2389
        %v2391 = vpop.f32.mrf.mxu0
        %2392 = vmatprep.mubr.f32.mxu0 0.0
        %2393 = vmatmul.mubr.f32.gmra.mxu0 %v2317
        %v2394 = vpop.f32.mrf.mxu0
        %v2395 = vadd.f32 %v489, %v2394
        %v2396 = vpop.f32.mrf.mxu0
        %2397 = vdwg.mxu0
        %v2398 = vsel %vm748, %v2390, -inf
        %2399 = vmax.xlane.f32.xlu0 %v2398
        %v2400 = vpop.xlane.xlu0 %2399
        %v2401 = vsel %vm748, %v2395, -inf
        %2402 = vmax.xlane.f32.xlu0 %v2401
        %v2403 = vpop.xlane.xlu0 %2402
        %v2404 = vsub.f32 %v2390, %v2400
        %v2405 = vsub.f32 %v2395, %v2403
        %v2406 = vmul.f32 %v2404, 1.442695
        %v2407 = vpow.pop %v2406
        %v2408 = vmul.f32 %v2405, 1.442695
        %v2409 = vpow.pop %v2408
        %v2410 = vsel %vm748, %v2407, 0.0
        %2411 = vadd.xlane.f32.xlu0 %v2410
        %v2412 = vpop.xlane.xlu0 %2411
        %v2413 = vsel %vm748, %v2409, 0.0
        %2414 = vadd.xlane.f32.xlu0 %v2413
        %v2415 = vpop.xlane.xlu0 %2414
        %v2416 = vrcp.pop %v2412
        %v2417 = vrcp.pop %v2415
        %v2418 = vmul.f32 %v2407, %v2416
        %v2419 = vmul.f32 %v2409, %v2417
        %2420 = vset.pattern.permute.xlu0 3
        %2421 = vperm.xlu0 %2420, %v775
        %v2422 = vpop.permute.xlu0 %2421
        %2424 = vset.pattern.permute.xlu0 3
        %2425 = vperm.xlu0 %2424, %v776
        %v2426 = vpop.permute.xlu0 %2425
        %v2428 = vmul.f32 %v494, %v2422
        %v2429 = vmul.f32 %v495, %v2426
        %v2430 = vmul.f32 %v2428, 1.442695
        %v2431 = vpow.pop %v2430
        %v2432 = vmul.f32 %v2429, 1.442695
        %v2433 = vpow.pop %v2432
        %2434 = vset.pattern.permute.xlu0 3
        %2435 = vperm.xlu0 %2434, %v777
        %v2436 = vpop.permute.xlu0 %2435
        %2438 = vset.pattern.permute.xlu0 3
        %2439 = vperm.xlu0 %2438, %v778
        %v2440 = vpop.permute.xlu0 %2439
        %v2442 = vmul.f32 %v2436, %v2431
        %v2443 = vmul.f32 %v2440, %v2433
        %v2444 = vld [vmem:[%s384 + $0x3] sm:$0x1]
        %v2445 = vld [vmem:[%s384 + $0x7] sm:$0x1]
        %v2446 = vld [vmem:[%s384 + $0xb] sm:$0x1]
        %v2447 = vld [vmem:[%s384 + $0xf] sm:$0x1]
        %v2448 = vld [vmem:[%s384 + $0x13] sm:$0x1]
        %v2449 = vld [vmem:[%s384 + $0x17] sm:$0x1]
        %v2450 = vld [vmem:[%s384 + $0x1b] sm:$0x1]
        %v2451 = vld [vmem:[%s384 + $0x1f] sm:$0x1]
        %v2452 = vld [vmem:[%s384 + $0x23] sm:$0x1]
        %v2453 = vld [vmem:[%s384 + $0x27] sm:$0x1]
        %v2454 = vld [vmem:[%s384 + $0x2b] sm:$0x1]
        %v2455 = vld [vmem:[%s384 + $0x2f] sm:$0x1]
        %v2456 = vld [vmem:[%s384 + $0x33] sm:$0x1]
        %v2457 = vld [vmem:[%s384 + $0x37] sm:$0x1]
        %v2458 = vld [vmem:[%s384 + $0x3b] sm:$0x1]
        %v2459 = vld [vmem:[%s384 + $0x3f] sm:$0x1]
        %v2476 = vrot.slane %v2445, 7
        %v2477 = vsel %vm586, %v2476, %v2444
        %v2478 = vrot.slane %v2446, 6
        %v2479 = vsel %vm589, %v2478, %v2477
        %v2480 = vrot.slane %v2447, 5
        %v2481 = vsel %vm592, %v2480, %v2479
        %v2482 = vrot.slane %v2448, 4
        %v2483 = vsel %vm595, %v2482, %v2481
        %v2484 = vrot.slane %v2449, 3
        %v2485 = vsel %vm598, %v2484, %v2483
        %v2486 = vrot.slane %v2450, 2
        %v2487 = vsel %vm601, %v2486, %v2485
        %v2488 = vrot.slane %v2451, 1
        %v2489 = vsel %vm604, %v2488, %v2487
        %v2490 = vrot.slane %v2453, 7
        %v2491 = vsel %vm586, %v2490, %v2452
        %v2492 = vrot.slane %v2454, 6
        %v2493 = vsel %vm589, %v2492, %v2491
        %v2494 = vrot.slane %v2455, 5
        %v2495 = vsel %vm592, %v2494, %v2493
        %v2496 = vrot.slane %v2456, 4
        %v2497 = vsel %vm595, %v2496, %v2495
        %v2498 = vrot.slane %v2457, 3
        %v2499 = vsel %vm598, %v2498, %v2497
        %v2500 = vrot.slane %v2458, 2
        %v2501 = vsel %vm601, %v2500, %v2499
        %v2502 = vrot.slane %v2459, 1
        %v2503 = vsel %vm604, %v2502, %v2501
        %v2507 = vsel %vm748, %v2418, 0
        %v2510 = vsel %vm748, %v2419, 0
        %2512 = vmatprep.subr.mxu0 0.0
        %2513 = vmatpush1.msra.mxu0 0.0
        %2514 = vmatprep.subr.mxu0 0.0
        %2515 = vmatpush1.msra.mxu0 0.0
        %2516 = vmatprep.subr.mxu0 0.0
        %2517 = vmatpush1.msra.mxu0 0.0
        %2518 = vmatprep.subr.mxu0 0.0
        %2519 = vmatpush1.msra.mxu0 0.0
        %2520 = vmatprep.subr.mxu0 0.0
        %2521 = vmatpush1.msra.mxu0 0.0
        %2522 = vmatprep.subr.mxu0 0.0
        %2523 = vmatpush1.msra.mxu0 0.0
        %2524 = vmatprep.subr.mxu0 0.0
        %2525 = vmatpush1.msra.mxu0 0.0
        %2526 = vmatprep.subr.mxu0 0.0
        %2527 = vmatpush1.msra.mxu0 0.0
        %2528 = vmatprep.subr.mxu0 0.0
        %2529 = vmatpush1.msra.mxu0 0.0
        %2530 = vmatprep.subr.mxu0 0.0
        %2531 = vmatpush1.msra.mxu0 0.0
        %2532 = vmatprep.subr.mxu0 0.0
        %2533 = vmatpush1.msra.mxu0 0.0
        %2534 = vmatprep.subr.mxu0 0.0
        %2535 = vmatpush1.msra.mxu0 0.0
        %2536 = vmatprep.subr.mxu0 0.0
        %2537 = vmatpush1.msra.mxu0 0.0
        %2538 = vmatprep.subr.mxu0 0.0
        %2539 = vmatpush1.msra.mxu0 0.0
        %2540 = vmatprep.subr.mxu0 0.0
        %2541 = vmatpush1.msra.mxu0 %v2503
        %2542 = vmatprep.subr.mxu0 0.0
        %2543 = vmatpush1.msra.mxu0 %v2489
        %2544 = vmatprep.subr.mxu0 0.0
        %2545 = vmatpush2.msra.mxu0 0.0
        %2546 = vmatprep.subr.mxu0 0.0
        %2547 = vmatpush2.msra.mxu0 0.0
        %2548 = vmatprep.subr.mxu0 0.0
        %2549 = vmatpush2.msra.mxu0 0.0
        %2550 = vmatprep.subr.mxu0 0.0
        %2551 = vmatpush2.msra.mxu0 0.0
        %2552 = vmatprep.subr.mxu0 0.0
        %2553 = vmatpush2.msra.mxu0 0.0
        %2554 = vmatprep.subr.mxu0 0.0
        %2555 = vmatpush2.msra.mxu0 0.0
        %2556 = vmatprep.subr.mxu0 0.0
        %2557 = vmatpush2.msra.mxu0 0.0
        %2558 = vmatprep.subr.mxu0 0.0
        %2559 = vmatpush2.msra.mxu0 0.0
        %2560 = vmatprep.subr.mxu0 0.0
        %2561 = vmatpush2.msra.mxu0 0.0
        %2562 = vmatprep.subr.mxu0 0.0
        %2563 = vmatpush2.msra.mxu0 0.0
        %2564 = vmatprep.subr.mxu0 0.0
        %2565 = vmatpush2.msra.mxu0 0.0
        %2566 = vmatprep.subr.mxu0 0.0
        %2567 = vmatpush2.msra.mxu0 0.0
        %2568 = vmatprep.subr.mxu0 0.0
        %2569 = vmatpush2.msra.mxu0 0.0
        %2570 = vmatprep.subr.mxu0 0.0
        %2571 = vmatpush2.msra.mxu0 0.0
        %2572 = vmatprep.subr.mxu0 0.0
        %2573 = vmatpush2.msra.mxu0 0.0
        %2574 = vmatprep.subr.mxu0 0.0
        %2575 = vmatpush2.msra.mxu0 0.0
        %2576 = vmatprep.mubr.f32.mxu0 0.0
        %2577 = vmatmul.mubr.f32.gmra.mxu0 %v2507
        %v2578 = vpop.f32.mrf.mxu0
        %v2579 = vadd.f32 0.0, %v2578
        %v2580 = vpop.f32.mrf.mxu0
        %2581 = vmatprep.mubr.f32.mxu0 0.0
        %2582 = vmatmul.mubr.f32.gmra.mxu0 %v2510
        %v2583 = vpop.f32.mrf.mxu0
        %v2584 = vadd.f32 0.0, %v2583
        %v2585 = vpop.f32.mrf.mxu0
        %2586 = vdwg.mxu0
        %s2587 = scalar_lea.vmem %s434, 48 [#allocation9]
        %2588 = vst.msk [vmem:[%s2587] sm:$0xff] %vm748, %v2418
        %2589 = vst.msk [vmem:[%s2587 + $0x8] sm:$0xff] %vm748, %v2419
        %s2590 = scalar_lea.vmem %s441, 48 [#allocation11]
        %2591 = vst.msk [vmem:[%s2590] sm:$0xff] %vm748, %v2442
        %2592 = vst.msk [vmem:[%s2590 + $0x8] sm:$0xff] %vm748, %v2443
        %v2595 = vcombine.high %v2579, %v2579
        %v2597 = vunpack.c.l.s4 1966171168
        %v2598 = vunpack.c.0.s8 %v2597
        %v2599 = vlaneseq
        %v2600 = vshrl.u32 %v2599, 7
        %v2601 = vsub.s32 %v2598, %v2600
        %v2602 = vrot.slane %v2579, %v2601
        %v2604 = vunpack.c.l.s4 1966171168
        %v2605 = vunpack.c.0.s8 %v2604
        %v2606 = vlaneseq
        %v2607 = vshrl.u32 %v2606, 7
        %v2608 = vsub.s32 %v2605, %v2607
        %v2609 = vrot.slane %v2595, %v2608
        %v2610 = vcombine.high %v2602, %v2602
        %v2611 = vcombine.high %v2609, %v2609
        %v2613 = vunpack.c.l.s4 1966171168
        %v2614 = vunpack.c.0.s8 %v2613
        %v2615 = vlaneseq
        %v2616 = vshrl.u32 %v2615, 7
        %v2617 = vsub.s32 %v2614, %v2616
        %v2618 = vrot.slane %v2602, %v2617
        %v2620 = vunpack.c.l.s4 1966171168
        %v2621 = vunpack.c.0.s8 %v2620
        %v2622 = vlaneseq
        %v2623 = vshrl.u32 %v2622, 7
        %v2624 = vsub.s32 %v2621, %v2623
        %v2625 = vrot.slane %v2609, %v2624
        %v2627 = vunpack.c.l.s4 1966171168
        %v2628 = vunpack.c.0.s8 %v2627
        %v2629 = vlaneseq
        %v2630 = vshrl.u32 %v2629, 7
        %v2631 = vsub.s32 %v2628, %v2630
        %v2632 = vrot.slane %v2610, %v2631
        %v2634 = vunpack.c.l.s4 1966171168
        %v2635 = vunpack.c.0.s8 %v2634
        %v2636 = vlaneseq
        %v2637 = vshrl.u32 %v2636, 7
        %v2638 = vsub.s32 %v2635, %v2637
        %v2639 = vrot.slane %v2611, %v2638
        %v2640 = vcombine.high %v2618, %v2618
        %v2641 = vcombine.high %v2625, %v2625
        %v2642 = vcombine.high %v2632, %v2632
        %v2643 = vcombine.high %v2639, %v2639
        %v2644 = vcombine.high %v2584, %v2584
        %v2646 = vunpack.c.l.s4 1966171168
        %v2647 = vunpack.c.0.s8 %v2646
        %v2648 = vlaneseq
        %v2649 = vshrl.u32 %v2648, 7
        %v2650 = vsub.s32 %v2647, %v2649
        %v2651 = vrot.slane %v2584, %v2650
        %v2653 = vunpack.c.l.s4 1966171168
        %v2654 = vunpack.c.0.s8 %v2653
        %v2655 = vlaneseq
        %v2656 = vshrl.u32 %v2655, 7
        %v2657 = vsub.s32 %v2654, %v2656
        %v2658 = vrot.slane %v2644, %v2657
        %v2659 = vcombine.high %v2651, %v2651
        %v2660 = vcombine.high %v2658, %v2658
        %v2662 = vunpack.c.l.s4 1966171168
        %v2663 = vunpack.c.0.s8 %v2662
        %v2664 = vlaneseq
        %v2665 = vshrl.u32 %v2664, 7
        %v2666 = vsub.s32 %v2663, %v2665
        %v2667 = vrot.slane %v2651, %v2666
        %v2669 = vunpack.c.l.s4 1966171168
        %v2670 = vunpack.c.0.s8 %v2669
        %v2671 = vlaneseq
        %v2672 = vshrl.u32 %v2671, 7
        %v2673 = vsub.s32 %v2670, %v2672
        %v2674 = vrot.slane %v2658, %v2673
        %v2676 = vunpack.c.l.s4 1966171168
        %v2677 = vunpack.c.0.s8 %v2676
        %v2678 = vlaneseq
        %v2679 = vshrl.u32 %v2678, 7
        %v2680 = vsub.s32 %v2677, %v2679
        %v2681 = vrot.slane %v2659, %v2680
        %v2683 = vunpack.c.l.s4 1966171168
        %v2684 = vunpack.c.0.s8 %v2683
        %v2685 = vlaneseq
        %v2686 = vshrl.u32 %v2685, 7
        %v2687 = vsub.s32 %v2684, %v2686
        %v2688 = vrot.slane %v2660, %v2687
        %v2689 = vcombine.high %v2667, %v2667
        %v2690 = vcombine.high %v2674, %v2674
        %v2691 = vcombine.high %v2681, %v2681
        %v2692 = vcombine.high %v2688, %v2688
        %2709 = vst.msk [vmem:[%s427 + $0x3] sm:$0x1] %vm1070, %v2618
        %2710 = vst.msk [vmem:[%s427 + $0x7] sm:$0x1] %vm1070, %v2632
        %2711 = vst.msk [vmem:[%s427 + $0xb] sm:$0x1] %vm1070, %v2640
        %2712 = vst.msk [vmem:[%s427 + $0xf] sm:$0x1] %vm1070, %v2642
        %2713 = vst.msk [vmem:[%s427 + $0x13] sm:$0x1] %vm1070, %v2625
        %2714 = vst.msk [vmem:[%s427 + $0x17] sm:$0x1] %vm1070, %v2639
        %2715 = vst.msk [vmem:[%s427 + $0x1b] sm:$0x1] %vm1070, %v2641
        %2716 = vst.msk [vmem:[%s427 + $0x1f] sm:$0x1] %vm1070, %v2643
        %2717 = vst.msk [vmem:[%s427 + $0x23] sm:$0x1] %vm1070, %v2667
        %2718 = vst.msk [vmem:[%s427 + $0x27] sm:$0x1] %vm1070, %v2681
        %2719 = vst.msk [vmem:[%s427 + $0x2b] sm:$0x1] %vm1070, %v2689
        %2720 = vst.msk [vmem:[%s427 + $0x2f] sm:$0x1] %vm1070, %v2691
        %2721 = vst.msk [vmem:[%s427 + $0x33] sm:$0x1] %vm1070, %v2674
        %2722 = vst.msk [vmem:[%s427 + $0x37] sm:$0x1] %vm1070, %v2688
        %2723 = vst.msk [vmem:[%s427 + $0x3b] sm:$0x1] %vm1070, %v2690
        %2724 = vst.msk [vmem:[%s427 + $0x3f] sm:$0x1] %vm1070, %v2692
        %s2725 = sand.u32 %s161, 1
        %s2726 = scalar_lea.sflag [#allocation4], %s2725
        %s2727 = sand.u32 %s161, 1
        %s2728 = smul.addr %s2727, 64
        %s2729 = scalar_lea.vmem [#allocation8], %s2728
        %s2730 = sand.u32 %s31, 1
        %s2731 = scalar_lea.sflag [#allocation10], %s2730
        %s2732 = sand.u32 %s189, 1
        %s2733 = smul.addr %s2732, 64
        %s2734 = scalar_lea.vmem [#allocation9], %s2733
        %s2735 = sand.u32 %s31, 1
        %s2736 = scalar_lea.sflag [#allocation10], %s2735
        %s2737 = sand.u32 %s217, 1
        %s2738 = smul.addr %s2737, 64
        %s2739 = scalar_lea.vmem [#allocation11], %s2738
        %s2740 = smul.u32 2, %s36
        %p2741 = scmp.lt.s32.totalorder %s35, 1
        %s2742 = scalar_select %p2741, %s35, 1
        %p2743 = scmp.lt.s32.totalorder %s2740, 1
        %s2744 = scalar_select %p2743, %s2740, 1
        %s2745 = smul.addr %s2742, 2
        %s2746 = sadd.s32 %s2744, %s2745
        %s2747 = smul.addr %s2746, 8
        %s2748 = scalar_lea.vmem %s7, %s2747
        // Predicated region
        $region49: #{anomaly_attention.1} parent=35 // pred_check
          %p2749 = pneg %p171
        $region50: #{anomaly_attention.1} parent=35 // pred_check_branch
          %2751 = sbr.rel (%p2749) target = $region52
        $region51: #{anomaly_attention.1} parent=35 // pred_region
          %s2752 = smul.u32 16, %s36
          %s2754 = ssub.s32 1024, 1024
          %2755 = vsyncadd %s2726, %s2754
          %s2756 = smul.addr %s35, 16
          %s2757 = sadd.s32 %s2752, %s2756
          %s2758 = smul.addr %s2757, 64
          %s2759 = scalar_lea.hbm %s4, %s2758
          %s2760 = sshll.u32 %s2729, 4
          %s2761 = int_to_ptr.vmem [resolvable:$true] %s2760
          %2766 = dma.vmem_to_hbm [thread:$0]  %s2761, 1024, %s2759, %s2726, 64, 64, 4
        $region52: #{anomaly_attention.1} parent=35 // pred_fallthru
          _
        // Predicated region
        $region53: #{anomaly_attention.1} parent=35 // pred_check
          %p2767 = pneg %p199
        $region54: #{anomaly_attention.1} parent=35 // pred_check_branch
          %2769 = sbr.rel (%p2767) target = $region56
        $region55: #{anomaly_attention.1} parent=35 // pred_region
          %s2770 = smul.u32 2, %s36
          %s2772 = ssub.s32 1024, 1024
          %2773 = vsyncadd %s2731, %s2772
          %s2774 = smul.addr %s35, 8
          %s2775 = sadd.s32 %s2770, %s2774
          %s2776 = smul.addr %s2775, 128
          %s2777 = scalar_lea.hbm %s5, %s2776
          %s2778 = sshll.u32 %s2734, 4
          %s2779 = int_to_ptr.vmem [resolvable:$true] %s2778
          %2784 = dma.vmem_to_hbm [thread:$0]  %s2779, 1024, %s2777, %s2731, 128, 128, 8
        $region56: #{anomaly_attention.1} parent=35 // pred_fallthru
          _
        // Predicated region
        $region57: #{anomaly_attention.1} parent=35 // pred_check
          %p2785 = pneg %p227
        $region58: #{anomaly_attention.1} parent=35 // pred_check_branch
          %2787 = sbr.rel (%p2785) target = $region60
        $region59: #{anomaly_attention.1} parent=35 // pred_region
          %s2788 = smul.u32 2, %s36
          %s2790 = ssub.s32 1024, 1024
          %2791 = vsyncadd %s2736, %s2790
          %s2792 = smul.addr %s35, 8
          %s2793 = sadd.s32 %s2788, %s2792
          %s2794 = smul.addr %s2793, 128
          %s2795 = scalar_lea.hbm %s6, %s2794
          %s2796 = sshll.u32 %s2739, 4
          %s2797 = int_to_ptr.vmem [resolvable:$true] %s2796
          %2802 = dma.vmem_to_hbm [thread:$0]  %s2797, 1024, %s2795, %s2736, 128, 128, 8
        $region60: #{anomaly_attention.1} parent=35 // pred_fallthru
          _
        // Predicated region
        $region61: #{anomaly_attention.1} parent=35 // pred_check
          %p2803 = pneg %p255
        $region62: #{anomaly_attention.1} parent=35 // pred_check_branch
          %2805 = sbr.rel (%p2803) target = $region64
        $region63: #{anomaly_attention.1} parent=35 // pred_region
          %s2806 = smul.u32 2, %s36
        $region64: #{anomaly_attention.1} parent=35 // pred_fallthru
          _
      $region36: #{anomaly_attention.1} parent=5 // pred_fallthru
        _
      %p2807 = scmp.le.s32.totalorder 2, %s26
      // Predicated region
      $region65: #{anomaly_attention.1} parent=5 // pred_check
        %p2808 = pneg %p2807
      $region66: #{anomaly_attention.1} parent=5 // pred_check_branch
        %2810 = sbr.rel (%p2808) target = $region68
      $region67: #{anomaly_attention.1} parent=5 // pred_region
        %s2811 = ssub.s32 %s26, 2
        // Predicated region
        $region69: #{anomaly_attention.1} parent=67 // pred_check
          %p2812 = pneg %p177
        $region70: #{anomaly_attention.1} parent=67 // pred_check_branch
          %2814 = sbr.rel (%p2812) target = $region72
        $region71: #{anomaly_attention.1} parent=67 // pred_region
          %s2815 = sand.u32 %s162, 1
          %s2816 = scalar_lea.sflag [#allocation4], %s2815
          %s2817 = sand.u32 %s162, 1
          %s2818 = smul.addr %s2817, 64
          %s2819 = scalar_lea.vmem [#allocation8], %s2818
          %2820 = dma.done %s2816, 1024
        $region72: #{anomaly_attention.1} parent=67 // pred_fallthru
          _
        // Predicated region
        $region73: #{anomaly_attention.1} parent=67 // pred_check
          %p2821 = pneg %p205
        $region74: #{anomaly_attention.1} parent=67 // pred_check_branch
          %2823 = sbr.rel (%p2821) target = $region76
        $region75: #{anomaly_attention.1} parent=67 // pred_region
          %s2824 = sand.u32 %s32, 1
          %s2825 = scalar_lea.sflag [#allocation10], %s2824
          %s2826 = sand.u32 %s190, 1
          %s2827 = smul.addr %s2826, 64
          %s2828 = scalar_lea.vmem [#allocation9], %s2827
          %2829 = dma.done %s2825, 1024
        $region76: #{anomaly_attention.1} parent=67 // pred_fallthru
          _
        // Predicated region
        $region77: #{anomaly_attention.1} parent=67 // pred_check
          %p2830 = pneg %p233
        $region78: #{anomaly_attention.1} parent=67 // pred_check_branch
          %2832 = sbr.rel (%p2830) target = $region80
        $region79: #{anomaly_attention.1} parent=67 // pred_region
          %s2833 = sand.u32 %s32, 1
          %s2834 = scalar_lea.sflag [#allocation10], %s2833
          %s2835 = sand.u32 %s218, 1
          %s2836 = smul.addr %s2835, 64
          %s2837 = scalar_lea.vmem [#allocation11], %s2836
          %2838 = dma.done %s2834, 1024
        $region80: #{anomaly_attention.1} parent=67 // pred_fallthru
          _
        // Predicated region
        $region81: #{anomaly_attention.1} parent=67 // pred_check
          %p2839 = pneg %p261
        $region82: #{anomaly_attention.1} parent=67 // pred_check_branch
          %2841 = sbr.rel (%p2839) target = $region84
        $region83: #{anomaly_attention.1} parent=67 // pred_region
          %s2842 = smul.u32 2, %s38
          %p2843 = scmp.lt.s32.totalorder %s37, 1
          %s2844 = scalar_select %p2843, %s37, 1
          %p2845 = scmp.lt.s32.totalorder %s2842, 1
          %s2846 = scalar_select %p2845, %s2842, 1
          %s2847 = smul.addr %s2844, 2
          %s2848 = sadd.s32 %s2846, %s2847
          %s2849 = smul.addr %s2848, 8
          %s2850 = scalar_lea.vmem %s7, %s2849
        $region84: #{anomaly_attention.1} parent=67 // pred_fallthru
          _
      $region68: #{anomaly_attention.1} parent=5 // pred_fallthru
        _
    $region6: #{anomaly_attention.1} parent=1 // loop_footer
      %s30 = sadd.s32 1, %s26
    $region7: #{anomaly_attention.1} parent=1 // loop_footer_branch
      %25 = sbr.rel target = $region3
    $region8: #{anomaly_attention.1} parent=1 // loop_exit
      _
    %2851 = vsyncpa [#allocation3], 1
    %s2852 = scalar_lea.sflag [#allocation3], 1
    %2853 = vsyncpa %s2852, 1
    %2854 = vsyncpa [#allocation6], 1
    %s2855 = scalar_lea.sflag [#allocation6], 1
    %2856 = vsyncpa %s2855, 1
    %2857 = vsyncpa [#allocation4], 1
    %s2858 = scalar_lea.sflag [#allocation4], 1
    %2859 = vsyncpa %s2858, 1
    %2860 = vsyncpa [#allocation10], 1
    %s2861 = scalar_lea.sflag [#allocation10], 1
    %2862 = vsyncpa %s2861, 1

</llo_original>
